<compile_context>
chip_gen: v7x
topology: tpu7x:2x2x1
jax: 0.10.0
libtpu: 0.0.40
codegen_flags: <defaults>
</compile_context>

<pallas_src>
import functools
import math

import jax
import jax.numpy as jnp
from jax.experimental import pallas as pl
from jax.experimental.pallas import tpu as pltpu  # noqa: F401  (TPU backend)

# -----------------------------------------------------------------------------
# Model hyper-parameters (small, consistent with the module's __init__)
# -----------------------------------------------------------------------------
VOCAB_SIZE = 64
D_MODEL = 32
N_HEADS = 4
N_LAYERS = 2
MAX_LEN = 16
BATCH = 2
SEQ = 8
LN_EPS = 1e-5
LANE = 128

_INV_SQRT2 = 0.7071067811865476

# Abramowitz & Stegun 7.1.26 erf approximation (max abs error 1.5e-7).
_ERF_P = 0.3275911
_ERF_A1 = 0.254829592
_ERF_A2 = -0.284496736
_ERF_A3 = 1.421413741
_ERF_A4 = -1.453152027
_ERF_A5 = 1.061405429


def _erf_poly(x):
    a = jnp.abs(x)
    t = 1.0 / (1.0 + _ERF_P * a)
    poly = ((((_ERF_A5 * t + _ERF_A4) * t + _ERF_A3) * t + _ERF_A2) * t + _ERF_A1) * t
    y = 1.0 - poly * jnp.exp(-(a * a))
    return jnp.where(x < 0.0, -y, y)


def _gelu_kernel(x):
    # PyTorch F.gelu default ("none"): 0.5*x*(1+erf(x/sqrt(2))); erf via exp-based poly.
    return 0.5 * x * (1.0 + _erf_poly(x * _INV_SQRT2))


def _gelu_exact(x):
    # Exact erf GELU for the pure-JAX reference (XLA lowers erf natively).
    return 0.5 * x * (1.0 + jax.lax.erf(x * _INV_SQRT2))


def _layer_norm(x, w, b, eps=LN_EPS):
    mu = jnp.mean(x, axis=-1, keepdims=True)
    xc = x - mu
    var = jnp.mean(xc * xc, axis=-1, keepdims=True)
    return xc * jax.lax.rsqrt(var + eps) * w + b


# -----------------------------------------------------------------------------
# Static slab layout (shared by pack_params and the kernel; all offsets are
# compile-time Python ints, every block starts on an 8-row boundary)
# -----------------------------------------------------------------------------
def _build_layout(batch, seq_len):
    bt = batch * seq_len
    hbt = N_HEADS * bt
    ff = 4 * D_MODEL
    names = [
        ("token_emb", VOCAB_SIZE, D_MODEL),
        ("pos", bt, D_MODEL),
        ("attn_bias", hbt, bt),
        ("head_mask", hbt, D_MODEL),
        ("head_w", D_MODEL, LANE),
        ("head_b", 1, LANE),
        ("ln_f_w", 1, D_MODEL),
        ("ln_f_b", 1, D_MODEL),
    ]
    for l in range(N_LAYERS):
        names += [
            (f"wqkv_{l}", D_MODEL, 3 * D_MODEL),
            (f"bqkv_{l}", 1, 3 * D_MODEL),
            (f"wo_{l}", D_MODEL, D_MODEL),
            (f"bo_{l}", 1, D_MODEL),
            (f"ln1w_{l}", 1, D_MODEL),
            (f"ln1b_{l}", 1, D_MODEL),
            (f"ln2w_{l}", 1, D_MODEL),
            (f"ln2b_{l}", 1, D_MODEL),
            (f"w1_{l}", D_MODEL, ff),
            (f"b1_{l}", 1, ff),
            (f"w2_{l}", ff, D_MODEL),
            (f"b2_{l}", 1, D_MODEL),
        ]
    layout = {}
    row = 0
    for name, r, c in names:
        layout[name] = (row, r, c)
        row += ((r + 7) // 8) * 8
    total_rows = ((row + 7) // 8) * 8
    return layout, total_rows


# -----------------------------------------------------------------------------
# Fused Pallas kernel: embeddings + N encoder layers + final LN + vocab head
# -----------------------------------------------------------------------------
def fused_lm_kernel(ids_ref, slab_ref, out_ref, *, layout, n_layers, n_heads,
                    d_model, vocab, batch, seq_len):
    f32 = jnp.float32
    bt = batch * seq_len

    def g(name):
        off, r, c = layout[name]
        return slab_ref[off:off + r, :c]

    # ---- token embedding gather as one-hot matmul + precomputed positional slab ----
    ids = ids_ref[...]                                                     # (BT, 1) i32
    tok_oh = (ids == jax.lax.broadcasted_iota(jnp.int32, (bt, vocab), 1)).astype(f32)
    x = jnp.dot(tok_oh, g("token_emb"), preferred_element_type=f32) + g("pos")

    attn_bias = g("attn_bias")        # (H*BT, BT) block-diagonal batch isolation
    head_mask = g("head_mask")        # (H*BT, D)  lane mask selecting each head
    dn_last = (((1,), (1,)), ((), ()))   # contract last dims (q @ k^T without .T)

    for l in range(n_layers):
        # ---- fused QKV projection (1/sqrt(hd) pre-folded into the Q block) ----
        qkv = jnp.dot(x, g(f"wqkv_{l}"), preferred_element_type=f32) + g(f"bqkv_{l}")
        q = qkv[:, :d_model]
        k = qkv[:, d_model:2 * d_model]
        v = qkv[:, 2 * d_model:3 * d_model]

        # ---- heads stacked along sublanes: one score matmul / softmax / P·V ----
        q_stack = jnp.concatenate([q] * n_heads, axis=0) * head_mask       # (H*BT, D)
        s = jax.lax.dot_general(q_stack, k, dn_last, preferred_element_type=f32)
        s = s + attn_bias                                                   # (H*BT, BT)
        s = s - jnp.max(s, axis=-1, keepdims=True)
        p = jnp.exp(s)
        p = p * pl.reciprocal(jnp.sum(p, axis=-1, keepdims=True), approx=True)

        c = jnp.dot(p, v, preferred_element_type=f32) * head_mask          # (H*BT, D)
        # masks are lane-disjoint, so summing the per-head sublane blocks
        # reconstructs the concatenated multi-head context (BT, D)
        ctx = c[0:bt, :]
        for h in range(1, n_heads):
            ctx = ctx + c[h * bt:(h + 1) * bt, :]
        attn = jnp.dot(ctx, g(f"wo_{l}"), preferred_element_type=f32) + g(f"bo_{l}")

        # residual + norm1 (dropout = identity in eval)
        x1 = _layer_norm(x + attn, g(f"ln1w_{l}"), g(f"ln1b_{l}"))

        # ---- feed-forward (D -> 4D -> D) with (near-)exact GELU ----
        hmid = jnp.dot(x1, g(f"w1_{l}"), preferred_element_type=f32) + g(f"b1_{l}")
        hmid = _gelu_kernel(hmid)
        ff = jnp.dot(hmid, g(f"w2_{l}"), preferred_element_type=f32) + g(f"b2_{l}")
        x = _layer_norm(x1 + ff, g(f"ln2w_{l}"), g(f"ln2b_{l}"))

    # ---- final LayerNorm + lane-dense (128-padded) vocab projection ----
    y = _layer_norm(x, g("ln_f_w"), g("ln_f_b"))
    out_ref[...] = jnp.dot(y, g("head_w"), preferred_element_type=f32) + g("head_b")


# -----------------------------------------------------------------------------
# Wrapper: one gridless pallas_call, whole model, 2 input DMAs / 1 output DMA
# -----------------------------------------------------------------------------
def model_forward(input_ids, slab):
    B, T = input_ids.shape
    bt = B * T
    layout, _ = _build_layout(B, T)
    ids2d = input_ids.reshape(bt, 1).astype(jnp.int32)

    out = pl.pallas_call(
        functools.partial(fused_lm_kernel,
                          layout=layout, n_layers=N_LAYERS, n_heads=N_HEADS,
                          d_model=D_MODEL, vocab=VOCAB_SIZE,
                          batch=B, seq_len=T),
        out_shape=jax.ShapeDtypeStruct((bt, LANE), jnp.float32),
    )(ids2d, slab)

    return out[:, :VOCAB_SIZE].reshape(B, T, VOCAB_SIZE)


# -----------------------------------------------------------------------------
# Parameter packing into ONE lane-dense (rows, 128) f32 slab (outside jit)
# -----------------------------------------------------------------------------
def pack_params(params, batch=BATCH, seq_len=SEQ):
    D, H = D_MODEL, N_HEADS
    hd = D // H
    V = params["head_w"].shape[0]
    bt = batch * seq_len
    layout, total_rows = _build_layout(batch, seq_len)
    slab = jnp.zeros((total_rows, LANE), jnp.float32)

    def put(name, val):
        nonlocal slab
        off, r, c = layout[name]
        slab = slab.at[off:off + r, :c].set(jnp.asarray(val, jnp.float32))

    put("token_emb", params["token_emb"])
    put("pos", jnp.tile(params["pos_emb"][:seq_len], (batch, 1)))

    # block-diagonal additive bias: rows only attend inside their own batch
    qb = jnp.arange(bt) // seq_len
    bias = jnp.where(qb[:, None] == qb[None, :], 0.0, -1e30).astype(jnp.float32)
    put("attn_bias", jnp.tile(bias, (H, 1)))

    # lane mask: sublane block h keeps only head h's lanes
    hmask = jnp.repeat(jnp.repeat(jnp.eye(H, dtype=jnp.float32), hd, axis=1), bt, axis=0)
    put("head_mask", hmask)

    put("head_w", jnp.zeros((D, LANE), jnp.float32).at[:, :V].set(params["head_w"].T))
    put("head_b", jnp.zeros((1, LANE), jnp.float32).at[:, :V].set(params["head_b"]))
    put("ln_f_w", params["ln_f_w"])
    put("ln_f_b", params["ln_f_b"])

    scale = 1.0 / math.sqrt(hd)
    for l, lp in enumerate(params["layers"]):
        (wqkv, bqkv, wo, bo, ln1w, ln1b, ln2w, ln2b, w1, b1, w2, b2) = lp
        wq_t = wqkv[:D].T * scale          # fold attention scale into Wq
        wk_t = wqkv[D:2 * D].T
        wv_t = wqkv[2 * D:].T
        put(f"wqkv_{l}", jnp.concatenate([wq_t, wk_t, wv_t], axis=1))
        put(f"bqkv_{l}", jnp.concatenate(
            [bqkv[:, :D] * scale, bqkv[:, D:2 * D], bqkv[:, 2 * D:]], axis=1))
        put(f"wo_{l}", wo.T)
        put(f"bo_{l}", bo)
        put(f"ln1w_{l}", ln1w)
        put(f"ln1b_{l}", ln1b)
        put(f"ln2w_{l}", ln2w)
        put(f"ln2b_{l}", ln2b)
        put(f"w1_{l}", w1.T)
        put(f"b1_{l}", b1)
        put(f"w2_{l}", w2.T)
        put(f"b2_{l}", b2)
    return slab


# -----------------------------------------------------------------------------
# Pure-JAX reference (same math, no Pallas, exact erf GELU) for verification
# -----------------------------------------------------------------------------
def ref_forward(input_ids, params, n_heads):
    B, T = input_ids.shape
    D = params["token_emb"].shape[1]
    hd = D // n_heads
    x = params["token_emb"][input_ids] + params["pos_emb"][jnp.arange(T)][None, :, :]
    for lp in params["layers"]:
        (wqkv, bqkv, wo, bo, ln1w, ln1b, ln2w, ln2b, w1, b1, w2, b2) = lp
        qkv = x @ wqkv.T + bqkv[0]
        q, k, v = qkv[..., :D], qkv[..., D:2 * D], qkv[..., 2 * D:]
        split = lambda t: t.reshape(B, T, n_heads, hd).transpose(0, 2, 1, 3)
        qh, kh, vh = split(q), split(k), split(v)
        s = jnp.einsum("bhtd,bhsd->bhts", qh, kh) / (hd ** 0.5)
        p = jax.nn.softmax(s, axis=-1)
        attn = jnp.einsum("bhts,bhsd->bhtd", p, vh).transpose(0, 2, 1, 3).reshape(B, T, D)
        attn = attn @ wo.T + bo[0]
        x1 = _layer_norm(x + attn, ln1w[0], ln1b[0])
        h1 = _gelu_exact(x1 @ w1.T + b1[0])
        x = _layer_norm(x1 + h1 @ w2.T + b2[0], ln2w[0], ln2b[0])
    y = _layer_norm(x, params["ln_f_w"][0], params["ln_f_b"][0])
    return y @ params["head_w"].T + params["head_b"][0]


# -----------------------------------------------------------------------------
# Deterministic parameter initialization (PyTorch weight conventions)
# -----------------------------------------------------------------------------
def init_params(key):
    n_keys = 4 + N_LAYERS * 8
    keys = jax.random.split(key, n_keys)
    ki = iter(range(n_keys))
    nrm = lambda k, shape, s: (jax.random.normal(keys[k], shape, jnp.float32) * s)

    params = {
        "token_emb": nrm(next(ki), (VOCAB_SIZE, D_MODEL), 0.05),
        "pos_emb": nrm(next(ki), (MAX_LEN, D_MODEL), 0.05),
        "ln_f_w": jnp.ones((1, D_MODEL), jnp.float32),
        "ln_f_b": jnp.zeros((1, D_MODEL), jnp.float32),
        "head_w": nrm(next(ki), (VOCAB_SIZE, D_MODEL), 0.05),
        "head_b": nrm(next(ki), (1, VOCAB_SIZE), 0.02),
        "layers": [],
    }
    for _ in range(N_LAYERS):
        wqkv = nrm(next(ki), (3 * D_MODEL, D_MODEL), 0.05)
        bqkv = nrm(next(ki), (1, 3 * D_MODEL), 0.02)
        wo = nrm(next(ki), (D_MODEL, D_MODEL), 0.05)
        bo = nrm(next(ki), (1, D_MODEL), 0.02)
        ln1w = jnp.ones((1, D_MODEL), jnp.float32)
        ln1b = jnp.zeros((1, D_MODEL), jnp.float32)
        ln2w = jnp.ones((1, D_MODEL), jnp.float32)
        ln2b = jnp.zeros((1, D_MODEL), jnp.float32)
        w1 = nrm(next(ki), (4 * D_MODEL, D_MODEL), 0.05)
        b1 = nrm(next(ki), (1, 4 * D_MODEL), 0.02)
        w2 = nrm(next(ki), (D_MODEL, 4 * D_MODEL), 0.05)
        b2 = nrm(next(ki), (1, D_MODEL), 0.02)
        params["layers"].append(
            (wqkv, bqkv, wo, bo, ln1w, ln1b, ln2w, ln2b, w1, b1, w2, b2))
    return params


if __name__ == "__main__":
    key = jax.random.PRNGKey(0)
    pkey, ikey = jax.random.split(key)
    params = init_params(pkey)
    slab = pack_params(params, BATCH, SEQ)     # one-time layout prep, outside jit
    input_ids = jax.random.randint(ikey, (BATCH, SEQ), 0, VOCAB_SIZE, dtype=jnp.int32)

    logits = jax.jit(model_forward)(input_ids, slab)
    logits = jax.block_until_ready(logits)
    assert logits.shape == (BATCH, SEQ, VOCAB_SIZE), logits.shape

    ref = jax.block_until_ready(ref_forward(input_ids, params, N_HEADS))
    assert jnp.allclose(logits, ref, atol=2e-3, rtol=2e-3), (
        float(jnp.max(jnp.abs(logits - ref))))

    print("KERNEL_OK")
</pallas_src>

<mosaic_0001>
module attributes {stable_mosaic.version = 11 : i64} {
  func.func @fused_lm_kernel(%arg0: memref<16x1xi32, #tpu.memory_space<vmem>>, %arg1: memref<840x128xf32, #tpu.memory_space<vmem>>, %arg2: memref<16x128xf32, #tpu.memory_space<vmem>>) attributes {dimension_semantics = [], scalar_prefetch = 0 : i64, scratch_operands = 0 : i64, tpu.core_type = #tpu.core_type<tc>} {
    %c0 = arith.constant 0 : index
    %c0_0 = arith.constant 0 : index
    %0 = vector.load %arg0[%c0, %c0_0] : memref<16x1xi32, #tpu.memory_space<vmem>>, vector<16x1xi32>
    %1 = tpu.iota {dimensions = array<i32: 1>} : vector<16x64xi32>
    %2 = vector.broadcast %0 : vector<16x1xi32> to vector<16x64xi32>
    %3 = arith.cmpi eq, %2, %1 : vector<16x64xi32>
    %4 = arith.extui %3 : vector<16x64xi1> to vector<16x64xi32>
    %5 = arith.sitofp %4 : vector<16x64xi32> to vector<16x64xf32>
    %c0_1 = arith.constant 0 : index
    %c0_2 = arith.constant 0 : index
    %6 = vector.load %arg1[%c0_1, %c0_2] : memref<840x128xf32, #tpu.memory_space<vmem>>, vector<64x32xf32>
    %cst = arith.constant dense<0.000000e+00> : vector<16x32xf32>
    %7 = tpu.matmul %5, %6, %cst {dimension_numbers = #tpu.dot_dimension_numbers<[1], [0], [0], [1], [0, 0, 1, 1], [], []>} : vector<16x64xf32>, vector<64x32xf32>, vector<16x32xf32> -> vector<16x32xf32>
    %c64 = arith.constant 64 : index
    %c0_3 = arith.constant 0 : index
    %8 = vector.load %arg1[%c64, %c0_3] : memref<840x128xf32, #tpu.memory_space<vmem>>, vector<16x32xf32>
    %9 = arith.addf %7, %8 : vector<16x32xf32>
    %c80 = arith.constant 80 : index
    %c0_4 = arith.constant 0 : index
    %10 = vector.load %arg1[%c80, %c0_4] : memref<840x128xf32, #tpu.memory_space<vmem>>, vector<64x16xf32>
    %c144 = arith.constant 144 : index
    %c0_5 = arith.constant 0 : index
    %11 = vector.load %arg1[%c144, %c0_5] : memref<840x128xf32, #tpu.memory_space<vmem>>, vector<64x32xf32>
    %c264 = arith.constant 264 : index
    %c0_6 = arith.constant 0 : index
    %12 = vector.load %arg1[%c264, %c0_6] : memref<840x128xf32, #tpu.memory_space<vmem>>, vector<32x96xf32>
    %cst_7 = arith.constant dense<0.000000e+00> : vector<16x96xf32>
    %13 = tpu.matmul %9, %12, %cst_7 {dimension_numbers = #tpu.dot_dimension_numbers<[1], [0], [0], [1], [0, 0, 1, 1], [], []>} : vector<16x32xf32>, vector<32x96xf32>, vector<16x96xf32> -> vector<16x96xf32>
    %c296 = arith.constant 296 : index
    %c0_8 = arith.constant 0 : index
    %14 = vector.load %arg1[%c296, %c0_8] : memref<840x128xf32, #tpu.memory_space<vmem>>, vector<1x96xf32>
    %15 = vector.broadcast %14 : vector<1x96xf32> to vector<16x96xf32>
    %16 = arith.addf %13, %15 : vector<16x96xf32>
    %17 = vector.extract_strided_slice %16 {offsets = [0, 0], sizes = [16, 32], strides = [1, 1]} : vector<16x96xf32> to vector<16x32xf32>
    %18 = vector.extract_strided_slice %16 {offsets = [0, 32], sizes = [16, 32], strides = [1, 1]} : vector<16x96xf32> to vector<16x32xf32>
    %19 = vector.extract_strided_slice %16 {offsets = [0, 64], sizes = [16, 32], strides = [1, 1]} : vector<16x96xf32> to vector<16x32xf32>
    %20 = tpu.concatenate %17, %17, %17, %17 in 0 : vector<16x32xf32>, vector<16x32xf32>, vector<16x32xf32>, vector<16x32xf32> -> vector<64x32xf32>
    %21 = arith.mulf %20, %11 : vector<64x32xf32>
    %cst_9 = arith.constant dense<0.000000e+00> : vector<64x16xf32>
    %22 = tpu.matmul %21, %18, %cst_9 {dimension_numbers = #tpu.dot_dimension_numbers<[1], [1], [0], [0], [0, 0, 1, 0], [], []>} : vector<64x32xf32>, vector<16x32xf32>, vector<64x16xf32> -> vector<64x16xf32>
    %23 = arith.addf %22, %10 : vector<64x16xf32>
    %cst_10 = arith.constant dense<0xFF800000> : vector<64xf32>
    %24 = vector.multi_reduction <maximumf>, %23, %cst_10 [1] : vector<64x16xf32> to vector<64xf32>
    %25 = vector.shape_cast %24 : vector<64xf32> to vector<64x1xf32>
    %26 = vector.broadcast %25 : vector<64x1xf32> to vector<64x16xf32>
    %27 = arith.subf %23, %26 : vector<64x16xf32>
    %28 = math.exp %27 : vector<64x16xf32>
    %cst_11 = arith.constant dense<0.000000e+00> : vector<64xf32>
    %29 = vector.multi_reduction <add>, %28, %cst_11 [1] : vector<64x16xf32> to vector<64xf32>
    %30 = vector.shape_cast %29 : vector<64xf32> to vector<64x1xf32>
    %31 = tpu.reciprocal %30 {approx = true} : vector<64x1xf32> -> vector<64x1xf32>
    %32 = vector.broadcast %31 : vector<64x1xf32> to vector<64x16xf32>
    %33 = arith.mulf %28, %32 : vector<64x16xf32>
    %cst_12 = arith.constant dense<0.000000e+00> : vector<64x32xf32>
    %34 = tpu.matmul %33, %19, %cst_12 {dimension_numbers = #tpu.dot_dimension_numbers<[1], [0], [0], [1], [0, 0, 1, 1], [], []>} : vector<64x16xf32>, vector<16x32xf32>, vector<64x32xf32> -> vector<64x32xf32>
    %35 = arith.mulf %34, %11 : vector<64x32xf32>
    %36 = vector.extract_strided_slice %35 {offsets = [0, 0], sizes = [16, 32], strides = [1, 1]} : vector<64x32xf32> to vector<16x32xf32>
    %37 = vector.extract_strided_slice %35 {offsets = [16, 0], sizes = [16, 32], strides = [1, 1]} : vector<64x32xf32> to vector<16x32xf32>
    %38 = arith.addf %36, %37 : vector<16x32xf32>
    %39 = vector.extract_strided_slice %35 {offsets = [32, 0], sizes = [16, 32], strides = [1, 1]} : vector<64x32xf32> to vector<16x32xf32>
    %40 = arith.addf %38, %39 : vector<16x32xf32>
    %41 = vector.extract_strided_slice %35 {offsets = [48, 0], sizes = [16, 32], strides = [1, 1]} : vector<64x32xf32> to vector<16x32xf32>
    %42 = arith.addf %40, %41 : vector<16x32xf32>
    %c304 = arith.constant 304 : index
    %c0_13 = arith.constant 0 : index
    %43 = vector.load %arg1[%c304, %c0_13] : memref<840x128xf32, #tpu.memory_space<vmem>>, vector<32x32xf32>
    %cst_14 = arith.constant dense<0.000000e+00> : vector<16x32xf32>
    %44 = tpu.matmul %42, %43, %cst_14 {dimension_numbers = #tpu.dot_dimension_numbers<[1], [0], [0], [1], [0, 0, 1, 1], [], []>} : vector<16x32xf32>, vector<32x32xf32>, vector<16x32xf32> -> vector<16x32xf32>
    %c336 = arith.constant 336 : index
    %c0_15 = arith.constant 0 : index
    %45 = vector.load %arg1[%c336, %c0_15] : memref<840x128xf32, #tpu.memory_space<vmem>>, vector<1x32xf32>
    %46 = vector.broadcast %45 : vector<1x32xf32> to vector<16x32xf32>
    %47 = arith.addf %44, %46 : vector<16x32xf32>
    %48 = arith.addf %9, %47 : vector<16x32xf32>
    %c344 = arith.constant 344 : index
    %c0_16 = arith.constant 0 : index
    %49 = vector.load %arg1[%c344, %c0_16] : memref<840x128xf32, #tpu.memory_space<vmem>>, vector<1x32xf32>
    %c352 = arith.constant 352 : index
    %c0_17 = arith.constant 0 : index
    %50 = vector.load %arg1[%c352, %c0_17] : memref<840x128xf32, #tpu.memory_space<vmem>>, vector<1x32xf32>
    %cst_18 = arith.constant dense<0.000000e+00> : vector<16xf32>
    %51 = vector.multi_reduction <add>, %48, %cst_18 [1] : vector<16x32xf32> to vector<16xf32>
    %52 = vector.shape_cast %51 : vector<16xf32> to vector<16x1xf32>
    %cst_19 = arith.constant 3.200000e+01 : f32
    %53 = vector.broadcast %cst_19 : f32 to vector<16x1xf32>
    %54 = arith.divf %52, %53 : vector<16x1xf32>
    %55 = vector.broadcast %54 : vector<16x1xf32> to vector<16x32xf32>
    %56 = arith.subf %48, %55 : vector<16x32xf32>
    %57 = arith.mulf %56, %56 : vector<16x32xf32>
    %cst_20 = arith.constant dense<0.000000e+00> : vector<16xf32>
    %58 = vector.multi_reduction <add>, %57, %cst_20 [1] : vector<16x32xf32> to vector<16xf32>
    %59 = vector.shape_cast %58 : vector<16xf32> to vector<16x1xf32>
    %cst_21 = arith.constant 3.200000e+01 : f32
    %60 = vector.broadcast %cst_21 : f32 to vector<16x1xf32>
    %61 = arith.divf %59, %60 : vector<16x1xf32>
    %cst_22 = arith.constant 9.99999974E-6 : f32
    %62 = vector.broadcast %cst_22 : f32 to vector<16x1xf32>
    %63 = arith.addf %61, %62 : vector<16x1xf32>
    %64 = math.rsqrt %63 : vector<16x1xf32>
    %65 = vector.broadcast %64 : vector<16x1xf32> to vector<16x32xf32>
    %66 = arith.mulf %56, %65 : vector<16x32xf32>
    %67 = vector.broadcast %49 : vector<1x32xf32> to vector<16x32xf32>
    %68 = arith.mulf %66, %67 : vector<16x32xf32>
    %69 = vector.broadcast %50 : vector<1x32xf32> to vector<16x32xf32>
    %70 = arith.addf %68, %69 : vector<16x32xf32>
    %c376 = arith.constant 376 : index
    %c0_23 = arith.constant 0 : index
    %71 = vector.load %arg1[%c376, %c0_23] : memref<840x128xf32, #tpu.memory_space<vmem>>, vector<32x128xf32>
    %cst_24 = arith.constant dense<0.000000e+00> : vector<16x128xf32>
    %72 = tpu.matmul %70, %71, %cst_24 {dimension_numbers = #tpu.dot_dimension_numbers<[1], [0], [0], [1], [0, 0, 1, 1], [], []>} : vector<16x32xf32>, vector<32x128xf32>, vector<16x128xf32> -> vector<16x128xf32>
    %c408 = arith.constant 408 : index
    %c0_25 = arith.constant 0 : index
    %73 = vector.load %arg1[%c408, %c0_25] : memref<840x128xf32, #tpu.memory_space<vmem>>, vector<1x128xf32>
    %74 = vector.broadcast %73 : vector<1x128xf32> to vector<16x128xf32>
    %75 = arith.addf %72, %74 : vector<16x128xf32>
    %cst_26 = arith.constant 5.000000e-01 : f32
    %76 = vector.broadcast %cst_26 : f32 to vector<16x128xf32>
    %77 = arith.mulf %76, %75 : vector<16x128xf32>
    %cst_27 = arith.constant 0.707106769 : f32
    %78 = vector.broadcast %cst_27 : f32 to vector<16x128xf32>
    %79 = arith.mulf %75, %78 : vector<16x128xf32>
    %80 = math.absf %79 : vector<16x128xf32>
    %cst_28 = arith.constant 0.327591091 : f32
    %81 = vector.broadcast %cst_28 : f32 to vector<16x128xf32>
    %82 = arith.mulf %81, %80 : vector<16x128xf32>
    %cst_29 = arith.constant 1.000000e+00 : f32
    %83 = vector.broadcast %cst_29 : f32 to vector<16x128xf32>
    %84 = arith.addf %83, %82 : vector<16x128xf32>
    %cst_30 = arith.constant 1.000000e+00 : f32
    %85 = vector.broadcast %cst_30 : f32 to vector<16x128xf32>
    %86 = arith.divf %85, %84 : vector<16x128xf32>
    %cst_31 = arith.constant 1.06140542 : f32
    %87 = vector.broadcast %cst_31 : f32 to vector<16x128xf32>
    %88 = arith.mulf %87, %86 : vector<16x128xf32>
    %cst_32 = arith.constant -1.45315206 : f32
    %89 = vector.broadcast %cst_32 : f32 to vector<16x128xf32>
    %90 = arith.addf %88, %89 : vector<16x128xf32>
    %91 = arith.mulf %90, %86 : vector<16x128xf32>
    %cst_33 = arith.constant 1.42141378 : f32
    %92 = vector.broadcast %cst_33 : f32 to vector<16x128xf32>
    %93 = arith.addf %91, %92 : vector<16x128xf32>
    %94 = arith.mulf %93, %86 : vector<16x128xf32>
    %cst_34 = arith.constant -0.284496725 : f32
    %95 = vector.broadcast %cst_34 : f32 to vector<16x128xf32>
    %96 = arith.addf %94, %95 : vector<16x128xf32>
    %97 = arith.mulf %96, %86 : vector<16x128xf32>
    %cst_35 = arith.constant 0.254829586 : f32
    %98 = vector.broadcast %cst_35 : f32 to vector<16x128xf32>
    %99 = arith.addf %97, %98 : vector<16x128xf32>
    %100 = arith.mulf %99, %86 : vector<16x128xf32>
    %101 = arith.mulf %80, %80 : vector<16x128xf32>
    %cst_36 = arith.constant 0.000000e+00 : f32
    %102 = vector.broadcast %cst_36 : f32 to vector<16x128xf32>
    %103 = arith.subf %102, %101 : vector<16x128xf32>
    %104 = math.exp %103 : vector<16x128xf32>
    %105 = arith.mulf %100, %104 : vector<16x128xf32>
    %cst_37 = arith.constant 1.000000e+00 : f32
    %106 = vector.broadcast %cst_37 : f32 to vector<16x128xf32>
    %107 = arith.subf %106, %105 : vector<16x128xf32>
    %cst_38 = arith.constant 0.000000e+00 : f32
    %108 = vector.broadcast %cst_38 : f32 to vector<16x128xf32>
    %109 = arith.cmpf olt, %79, %108 : vector<16x128xf32>
    %cst_39 = arith.constant 0.000000e+00 : f32
    %110 = vector.broadcast %cst_39 : f32 to vector<16x128xf32>
    %111 = arith.subf %110, %107 : vector<16x128xf32>
    %112 = arith.select %109, %111, %107 : vector<16x128xi1>, vector<16x128xf32>
    %cst_40 = arith.constant 1.000000e+00 : f32
    %113 = vector.broadcast %cst_40 : f32 to vector<16x128xf32>
    %114 = arith.addf %113, %112 : vector<16x128xf32>
    %115 = arith.mulf %77, %114 : vector<16x128xf32>
    %c416 = arith.constant 416 : index
    %c0_41 = arith.constant 0 : index
    %116 = vector.load %arg1[%c416, %c0_41] : memref<840x128xf32, #tpu.memory_space<vmem>>, vector<128x32xf32>
    %cst_42 = arith.constant dense<0.000000e+00> : vector<16x32xf32>
    %117 = tpu.matmul %115, %116, %cst_42 {dimension_numbers = #tpu.dot_dimension_numbers<[1], [0], [0], [1], [0, 0, 1, 1], [], []>} : vector<16x128xf32>, vector<128x32xf32>, vector<16x32xf32> -> vector<16x32xf32>
    %c544 = arith.constant 544 : index
    %c0_43 = arith.constant 0 : index
    %118 = vector.load %arg1[%c544, %c0_43] : memref<840x128xf32, #tpu.memory_space<vmem>>, vector<1x32xf32>
    %119 = vector.broadcast %118 : vector<1x32xf32> to vector<16x32xf32>
    %120 = arith.addf %117, %119 : vector<16x32xf32>
    %121 = arith.addf %70, %120 : vector<16x32xf32>
    %c360 = arith.constant 360 : index
    %c0_44 = arith.constant 0 : index
    %122 = vector.load %arg1[%c360, %c0_44] : memref<840x128xf32, #tpu.memory_space<vmem>>, vector<1x32xf32>
    %c368 = arith.constant 368 : index
    %c0_45 = arith.constant 0 : index
    %123 = vector.load %arg1[%c368, %c0_45] : memref<840x128xf32, #tpu.memory_space<vmem>>, vector<1x32xf32>
    %cst_46 = arith.constant dense<0.000000e+00> : vector<16xf32>
    %124 = vector.multi_reduction <add>, %121, %cst_46 [1] : vector<16x32xf32> to vector<16xf32>
    %125 = vector.shape_cast %124 : vector<16xf32> to vector<16x1xf32>
    %cst_47 = arith.constant 3.200000e+01 : f32
    %126 = vector.broadcast %cst_47 : f32 to vector<16x1xf32>
    %127 = arith.divf %125, %126 : vector<16x1xf32>
    %128 = vector.broadcast %127 : vector<16x1xf32> to vector<16x32xf32>
    %129 = arith.subf %121, %128 : vector<16x32xf32>
    %130 = arith.mulf %129, %129 : vector<16x32xf32>
    %cst_48 = arith.constant dense<0.000000e+00> : vector<16xf32>
    %131 = vector.multi_reduction <add>, %130, %cst_48 [1] : vector<16x32xf32> to vector<16xf32>
    %132 = vector.shape_cast %131 : vector<16xf32> to vector<16x1xf32>
    %cst_49 = arith.constant 3.200000e+01 : f32
    %133 = vector.broadcast %cst_49 : f32 to vector<16x1xf32>
    %134 = arith.divf %132, %133 : vector<16x1xf32>
    %cst_50 = arith.constant 9.99999974E-6 : f32
    %135 = vector.broadcast %cst_50 : f32 to vector<16x1xf32>
    %136 = arith.addf %134, %135 : vector<16x1xf32>
    %137 = math.rsqrt %136 : vector<16x1xf32>
    %138 = vector.broadcast %137 : vector<16x1xf32> to vector<16x32xf32>
    %139 = arith.mulf %129, %138 : vector<16x32xf32>
    %140 = vector.broadcast %122 : vector<1x32xf32> to vector<16x32xf32>
    %141 = arith.mulf %139, %140 : vector<16x32xf32>
    %142 = vector.broadcast %123 : vector<1x32xf32> to vector<16x32xf32>
    %143 = arith.addf %141, %142 : vector<16x32xf32>
    %c552 = arith.constant 552 : index
    %c0_51 = arith.constant 0 : index
    %144 = vector.load %arg1[%c552, %c0_51] : memref<840x128xf32, #tpu.memory_space<vmem>>, vector<32x96xf32>
    %cst_52 = arith.constant dense<0.000000e+00> : vector<16x96xf32>
    %145 = tpu.matmul %143, %144, %cst_52 {dimension_numbers = #tpu.dot_dimension_numbers<[1], [0], [0], [1], [0, 0, 1, 1], [], []>} : vector<16x32xf32>, vector<32x96xf32>, vector<16x96xf32> -> vector<16x96xf32>
    %c584 = arith.constant 584 : index
    %c0_53 = arith.constant 0 : index
    %146 = vector.load %arg1[%c584, %c0_53] : memref<840x128xf32, #tpu.memory_space<vmem>>, vector<1x96xf32>
    %147 = vector.broadcast %146 : vector<1x96xf32> to vector<16x96xf32>
    %148 = arith.addf %145, %147 : vector<16x96xf32>
    %149 = vector.extract_strided_slice %148 {offsets = [0, 0], sizes = [16, 32], strides = [1, 1]} : vector<16x96xf32> to vector<16x32xf32>
    %150 = vector.extract_strided_slice %148 {offsets = [0, 32], sizes = [16, 32], strides = [1, 1]} : vector<16x96xf32> to vector<16x32xf32>
    %151 = vector.extract_strided_slice %148 {offsets = [0, 64], sizes = [16, 32], strides = [1, 1]} : vector<16x96xf32> to vector<16x32xf32>
    %152 = tpu.concatenate %149, %149, %149, %149 in 0 : vector<16x32xf32>, vector<16x32xf32>, vector<16x32xf32>, vector<16x32xf32> -> vector<64x32xf32>
    %153 = arith.mulf %152, %11 : vector<64x32xf32>
    %cst_54 = arith.constant dense<0.000000e+00> : vector<64x16xf32>
    %154 = tpu.matmul %153, %150, %cst_54 {dimension_numbers = #tpu.dot_dimension_numbers<[1], [1], [0], [0], [0, 0, 1, 0], [], []>} : vector<64x32xf32>, vector<16x32xf32>, vector<64x16xf32> -> vector<64x16xf32>
    %155 = arith.addf %154, %10 : vector<64x16xf32>
    %cst_55 = arith.constant dense<0xFF800000> : vector<64xf32>
    %156 = vector.multi_reduction <maximumf>, %155, %cst_55 [1] : vector<64x16xf32> to vector<64xf32>
    %157 = vector.shape_cast %156 : vector<64xf32> to vector<64x1xf32>
    %158 = vector.broadcast %157 : vector<64x1xf32> to vector<64x16xf32>
    %159 = arith.subf %155, %158 : vector<64x16xf32>
    %160 = math.exp %159 : vector<64x16xf32>
    %cst_56 = arith.constant dense<0.000000e+00> : vector<64xf32>
    %161 = vector.multi_reduction <add>, %160, %cst_56 [1] : vector<64x16xf32> to vector<64xf32>
    %162 = vector.shape_cast %161 : vector<64xf32> to vector<64x1xf32>
    %163 = tpu.reciprocal %162 {approx = true} : vector<64x1xf32> -> vector<64x1xf32>
    %164 = vector.broadcast %163 : vector<64x1xf32> to vector<64x16xf32>
    %165 = arith.mulf %160, %164 : vector<64x16xf32>
    %cst_57 = arith.constant dense<0.000000e+00> : vector<64x32xf32>
    %166 = tpu.matmul %165, %151, %cst_57 {dimension_numbers = #tpu.dot_dimension_numbers<[1], [0], [0], [1], [0, 0, 1, 1], [], []>} : vector<64x16xf32>, vector<16x32xf32>, vector<64x32xf32> -> vector<64x32xf32>
    %167 = arith.mulf %166, %11 : vector<64x32xf32>
    %168 = vector.extract_strided_slice %167 {offsets = [0, 0], sizes = [16, 32], strides = [1, 1]} : vector<64x32xf32> to vector<16x32xf32>
    %169 = vector.extract_strided_slice %167 {offsets = [16, 0], sizes = [16, 32], strides = [1, 1]} : vector<64x32xf32> to vector<16x32xf32>
    %170 = arith.addf %168, %169 : vector<16x32xf32>
    %171 = vector.extract_strided_slice %167 {offsets = [32, 0], sizes = [16, 32], strides = [1, 1]} : vector<64x32xf32> to vector<16x32xf32>
    %172 = arith.addf %170, %171 : vector<16x32xf32>
    %173 = vector.extract_strided_slice %167 {offsets = [48, 0], sizes = [16, 32], strides = [1, 1]} : vector<64x32xf32> to vector<16x32xf32>
    %174 = arith.addf %172, %173 : vector<16x32xf32>
    %c592 = arith.constant 592 : index
    %c0_58 = arith.constant 0 : index
    %175 = vector.load %arg1[%c592, %c0_58] : memref<840x128xf32, #tpu.memory_space<vmem>>, vector<32x32xf32>
    %cst_59 = arith.constant dense<0.000000e+00> : vector<16x32xf32>
    %176 = tpu.matmul %174, %175, %cst_59 {dimension_numbers = #tpu.dot_dimension_numbers<[1], [0], [0], [1], [0, 0, 1, 1], [], []>} : vector<16x32xf32>, vector<32x32xf32>, vector<16x32xf32> -> vector<16x32xf32>
    %c624 = arith.constant 624 : index
    %c0_60 = arith.constant 0 : index
    %177 = vector.load %arg1[%c624, %c0_60] : memref<840x128xf32, #tpu.memory_space<vmem>>, vector<1x32xf32>
    %178 = vector.broadcast %177 : vector<1x32xf32> to vector<16x32xf32>
    %179 = arith.addf %176, %178 : vector<16x32xf32>
    %180 = arith.addf %143, %179 : vector<16x32xf32>
    %c632 = arith.constant 632 : index
    %c0_61 = arith.constant 0 : index
    %181 = vector.load %arg1[%c632, %c0_61] : memref<840x128xf32, #tpu.memory_space<vmem>>, vector<1x32xf32>
    %c640 = arith.constant 640 : index
    %c0_62 = arith.constant 0 : index
    %182 = vector.load %arg1[%c640, %c0_62] : memref<840x128xf32, #tpu.memory_space<vmem>>, vector<1x32xf32>
    %cst_63 = arith.constant dense<0.000000e+00> : vector<16xf32>
    %183 = vector.multi_reduction <add>, %180, %cst_63 [1] : vector<16x32xf32> to vector<16xf32>
    %184 = vector.shape_cast %183 : vector<16xf32> to vector<16x1xf32>
    %cst_64 = arith.constant 3.200000e+01 : f32
    %185 = vector.broadcast %cst_64 : f32 to vector<16x1xf32>
    %186 = arith.divf %184, %185 : vector<16x1xf32>
    %187 = vector.broadcast %186 : vector<16x1xf32> to vector<16x32xf32>
    %188 = arith.subf %180, %187 : vector<16x32xf32>
    %189 = arith.mulf %188, %188 : vector<16x32xf32>
    %cst_65 = arith.constant dense<0.000000e+00> : vector<16xf32>
    %190 = vector.multi_reduction <add>, %189, %cst_65 [1] : vector<16x32xf32> to vector<16xf32>
    %191 = vector.shape_cast %190 : vector<16xf32> to vector<16x1xf32>
    %cst_66 = arith.constant 3.200000e+01 : f32
    %192 = vector.broadcast %cst_66 : f32 to vector<16x1xf32>
    %193 = arith.divf %191, %192 : vector<16x1xf32>
    %cst_67 = arith.constant 9.99999974E-6 : f32
    %194 = vector.broadcast %cst_67 : f32 to vector<16x1xf32>
    %195 = arith.addf %193, %194 : vector<16x1xf32>
    %196 = math.rsqrt %195 : vector<16x1xf32>
    %197 = vector.broadcast %196 : vector<16x1xf32> to vector<16x32xf32>
    %198 = arith.mulf %188, %197 : vector<16x32xf32>
    %199 = vector.broadcast %181 : vector<1x32xf32> to vector<16x32xf32>
    %200 = arith.mulf %198, %199 : vector<16x32xf32>
    %201 = vector.broadcast %182 : vector<1x32xf32> to vector<16x32xf32>
    %202 = arith.addf %200, %201 : vector<16x32xf32>
    %c664 = arith.constant 664 : index
    %c0_68 = arith.constant 0 : index
    %203 = vector.load %arg1[%c664, %c0_68] : memref<840x128xf32, #tpu.memory_space<vmem>>, vector<32x128xf32>
    %cst_69 = arith.constant dense<0.000000e+00> : vector<16x128xf32>
    %204 = tpu.matmul %202, %203, %cst_69 {dimension_numbers = #tpu.dot_dimension_numbers<[1], [0], [0], [1], [0, 0, 1, 1], [], []>} : vector<16x32xf32>, vector<32x128xf32>, vector<16x128xf32> -> vector<16x128xf32>
    %c696 = arith.constant 696 : index
    %c0_70 = arith.constant 0 : index
    %205 = vector.load %arg1[%c696, %c0_70] : memref<840x128xf32, #tpu.memory_space<vmem>>, vector<1x128xf32>
    %206 = vector.broadcast %205 : vector<1x128xf32> to vector<16x128xf32>
    %207 = arith.addf %204, %206 : vector<16x128xf32>
    %cst_71 = arith.constant 5.000000e-01 : f32
    %208 = vector.broadcast %cst_71 : f32 to vector<16x128xf32>
    %209 = arith.mulf %208, %207 : vector<16x128xf32>
    %cst_72 = arith.constant 0.707106769 : f32
    %210 = vector.broadcast %cst_72 : f32 to vector<16x128xf32>
    %211 = arith.mulf %207, %210 : vector<16x128xf32>
    %212 = math.absf %211 : vector<16x128xf32>
    %cst_73 = arith.constant 0.327591091 : f32
    %213 = vector.broadcast %cst_73 : f32 to vector<16x128xf32>
    %214 = arith.mulf %213, %212 : vector<16x128xf32>
    %cst_74 = arith.constant 1.000000e+00 : f32
    %215 = vector.broadcast %cst_74 : f32 to vector<16x128xf32>
    %216 = arith.addf %215, %214 : vector<16x128xf32>
    %cst_75 = arith.constant 1.000000e+00 : f32
    %217 = vector.broadcast %cst_75 : f32 to vector<16x128xf32>
    %218 = arith.divf %217, %216 : vector<16x128xf32>
    %cst_76 = arith.constant 1.06140542 : f32
    %219 = vector.broadcast %cst_76 : f32 to vector<16x128xf32>
    %220 = arith.mulf %219, %218 : vector<16x128xf32>
    %cst_77 = arith.constant -1.45315206 : f32
    %221 = vector.broadcast %cst_77 : f32 to vector<16x128xf32>
    %222 = arith.addf %220, %221 : vector<16x128xf32>
    %223 = arith.mulf %222, %218 : vector<16x128xf32>
    %cst_78 = arith.constant 1.42141378 : f32
    %224 = vector.broadcast %cst_78 : f32 to vector<16x128xf32>
    %225 = arith.addf %223, %224 : vector<16x128xf32>
    %226 = arith.mulf %225, %218 : vector<16x128xf32>
    %cst_79 = arith.constant -0.284496725 : f32
    %227 = vector.broadcast %cst_79 : f32 to vector<16x128xf32>
    %228 = arith.addf %226, %227 : vector<16x128xf32>
    %229 = arith.mulf %228, %218 : vector<16x128xf32>
    %cst_80 = arith.constant 0.254829586 : f32
    %230 = vector.broadcast %cst_80 : f32 to vector<16x128xf32>
    %231 = arith.addf %229, %230 : vector<16x128xf32>
    %232 = arith.mulf %231, %218 : vector<16x128xf32>
    %233 = arith.mulf %212, %212 : vector<16x128xf32>
    %cst_81 = arith.constant 0.000000e+00 : f32
    %234 = vector.broadcast %cst_81 : f32 to vector<16x128xf32>
    %235 = arith.subf %234, %233 : vector<16x128xf32>
    %236 = math.exp %235 : vector<16x128xf32>
    %237 = arith.mulf %232, %236 : vector<16x128xf32>
    %cst_82 = arith.constant 1.000000e+00 : f32
    %238 = vector.broadcast %cst_82 : f32 to vector<16x128xf32>
    %239 = arith.subf %238, %237 : vector<16x128xf32>
    %cst_83 = arith.constant 0.000000e+00 : f32
    %240 = vector.broadcast %cst_83 : f32 to vector<16x128xf32>
    %241 = arith.cmpf olt, %211, %240 : vector<16x128xf32>
    %cst_84 = arith.constant 0.000000e+00 : f32
    %242 = vector.broadcast %cst_84 : f32 to vector<16x128xf32>
    %243 = arith.subf %242, %239 : vector<16x128xf32>
    %244 = arith.select %241, %243, %239 : vector<16x128xi1>, vector<16x128xf32>
    %cst_85 = arith.constant 1.000000e+00 : f32
    %245 = vector.broadcast %cst_85 : f32 to vector<16x128xf32>
    %246 = arith.addf %245, %244 : vector<16x128xf32>
    %247 = arith.mulf %209, %246 : vector<16x128xf32>
    %c704 = arith.constant 704 : index
    %c0_86 = arith.constant 0 : index
    %248 = vector.load %arg1[%c704, %c0_86] : memref<840x128xf32, #tpu.memory_space<vmem>>, vector<128x32xf32>
    %cst_87 = arith.constant dense<0.000000e+00> : vector<16x32xf32>
    %249 = tpu.matmul %247, %248, %cst_87 {dimension_numbers = #tpu.dot_dimension_numbers<[1], [0], [0], [1], [0, 0, 1, 1], [], []>} : vector<16x128xf32>, vector<128x32xf32>, vector<16x32xf32> -> vector<16x32xf32>
    %c832 = arith.constant 832 : index
    %c0_88 = arith.constant 0 : index
    %250 = vector.load %arg1[%c832, %c0_88] : memref<840x128xf32, #tpu.memory_space<vmem>>, vector<1x32xf32>
    %251 = vector.broadcast %250 : vector<1x32xf32> to vector<16x32xf32>
    %252 = arith.addf %249, %251 : vector<16x32xf32>
    %253 = arith.addf %202, %252 : vector<16x32xf32>
    %c648 = arith.constant 648 : index
    %c0_89 = arith.constant 0 : index
    %254 = vector.load %arg1[%c648, %c0_89] : memref<840x128xf32, #tpu.memory_space<vmem>>, vector<1x32xf32>
    %c656 = arith.constant 656 : index
    %c0_90 = arith.constant 0 : index
    %255 = vector.load %arg1[%c656, %c0_90] : memref<840x128xf32, #tpu.memory_space<vmem>>, vector<1x32xf32>
    %cst_91 = arith.constant dense<0.000000e+00> : vector<16xf32>
    %256 = vector.multi_reduction <add>, %253, %cst_91 [1] : vector<16x32xf32> to vector<16xf32>
    %257 = vector.shape_cast %256 : vector<16xf32> to vector<16x1xf32>
    %cst_92 = arith.constant 3.200000e+01 : f32
    %258 = vector.broadcast %cst_92 : f32 to vector<16x1xf32>
    %259 = arith.divf %257, %258 : vector<16x1xf32>
    %260 = vector.broadcast %259 : vector<16x1xf32> to vector<16x32xf32>
    %261 = arith.subf %253, %260 : vector<16x32xf32>
    %262 = arith.mulf %261, %261 : vector<16x32xf32>
    %cst_93 = arith.constant dense<0.000000e+00> : vector<16xf32>
    %263 = vector.multi_reduction <add>, %262, %cst_93 [1] : vector<16x32xf32> to vector<16xf32>
    %264 = vector.shape_cast %263 : vector<16xf32> to vector<16x1xf32>
    %cst_94 = arith.constant 3.200000e+01 : f32
    %265 = vector.broadcast %cst_94 : f32 to vector<16x1xf32>
    %266 = arith.divf %264, %265 : vector<16x1xf32>
    %cst_95 = arith.constant 9.99999974E-6 : f32
    %267 = vector.broadcast %cst_95 : f32 to vector<16x1xf32>
    %268 = arith.addf %266, %267 : vector<16x1xf32>
    %269 = math.rsqrt %268 : vector<16x1xf32>
    %270 = vector.broadcast %269 : vector<16x1xf32> to vector<16x32xf32>
    %271 = arith.mulf %261, %270 : vector<16x32xf32>
    %272 = vector.broadcast %254 : vector<1x32xf32> to vector<16x32xf32>
    %273 = arith.mulf %271, %272 : vector<16x32xf32>
    %274 = vector.broadcast %255 : vector<1x32xf32> to vector<16x32xf32>
    %275 = arith.addf %273, %274 : vector<16x32xf32>
    %c248 = arith.constant 248 : index
    %c0_96 = arith.constant 0 : index
    %276 = vector.load %arg1[%c248, %c0_96] : memref<840x128xf32, #tpu.memory_space<vmem>>, vector<1x32xf32>
    %c256 = arith.constant 256 : index
    %c0_97 = arith.constant 0 : index
    %277 = vector.load %arg1[%c256, %c0_97] : memref<840x128xf32, #tpu.memory_space<vmem>>, vector<1x32xf32>
    %cst_98 = arith.constant dense<0.000000e+00> : vector<16xf32>
    %278 = vector.multi_reduction <add>, %275, %cst_98 [1] : vector<16x32xf32> to vector<16xf32>
    %279 = vector.shape_cast %278 : vector<16xf32> to vector<16x1xf32>
    %cst_99 = arith.constant 3.200000e+01 : f32
    %280 = vector.broadcast %cst_99 : f32 to vector<16x1xf32>
    %281 = arith.divf %279, %280 : vector<16x1xf32>
    %282 = vector.broadcast %281 : vector<16x1xf32> to vector<16x32xf32>
    %283 = arith.subf %275, %282 : vector<16x32xf32>
    %284 = arith.mulf %283, %283 : vector<16x32xf32>
    %cst_100 = arith.constant dense<0.000000e+00> : vector<16xf32>
    %285 = vector.multi_reduction <add>, %284, %cst_100 [1] : vector<16x32xf32> to vector<16xf32>
    %286 = vector.shape_cast %285 : vector<16xf32> to vector<16x1xf32>
    %cst_101 = arith.constant 3.200000e+01 : f32
    %287 = vector.broadcast %cst_101 : f32 to vector<16x1xf32>
    %288 = arith.divf %286, %287 : vector<16x1xf32>
    %cst_102 = arith.constant 9.99999974E-6 : f32
    %289 = vector.broadcast %cst_102 : f32 to vector<16x1xf32>
    %290 = arith.addf %288, %289 : vector<16x1xf32>
    %291 = math.rsqrt %290 : vector<16x1xf32>
    %292 = vector.broadcast %291 : vector<16x1xf32> to vector<16x32xf32>
    %293 = arith.mulf %283, %292 : vector<16x32xf32>
    %294 = vector.broadcast %276 : vector<1x32xf32> to vector<16x32xf32>
    %295 = arith.mulf %293, %294 : vector<16x32xf32>
    %296 = vector.broadcast %277 : vector<1x32xf32> to vector<16x32xf32>
    %297 = arith.addf %295, %296 : vector<16x32xf32>
    %c208 = arith.constant 208 : index
    %c0_103 = arith.constant 0 : index
    %298 = vector.load %arg1[%c208, %c0_103] : memref<840x128xf32, #tpu.memory_space<vmem>>, vector<32x128xf32>
    %cst_104 = arith.constant dense<0.000000e+00> : vector<16x128xf32>
    %299 = tpu.matmul %297, %298, %cst_104 {dimension_numbers = #tpu.dot_dimension_numbers<[1], [0], [0], [1], [0, 0, 1, 1], [], []>} : vector<16x32xf32>, vector<32x128xf32>, vector<16x128xf32> -> vector<16x128xf32>
    %c240 = arith.constant 240 : index
    %c0_105 = arith.constant 0 : index
    %300 = vector.load %arg1[%c240, %c0_105] : memref<840x128xf32, #tpu.memory_space<vmem>>, vector<1x128xf32>
    %301 = vector.broadcast %300 : vector<1x128xf32> to vector<16x128xf32>
    %302 = arith.addf %299, %301 : vector<16x128xf32>
    %c0_106 = arith.constant 0 : index
    %c0_107 = arith.constant 0 : index
    %303 = vector.load %arg2[%c0_106, %c0_107] : memref<16x128xf32, #tpu.memory_space<vmem>>, vector<16x128xf32>
    tpu.vector_store %arg2[%c0_106, %c0_107], %302 {strides = array<i32>} : memref<16x128xf32, #tpu.memory_space<vmem>>, vector<16x128xf32>,
    return
  }
}

</mosaic_0001>

<llo_original>
// kernel: model_forward.1
$region0: #{model_forward.1}
  #allocation0 [shape = 'u32[]', space=smem, size = 0x4, offset = 0x4, fixed_abs, tag = 'smem constant byte address 0x4 - core index']
  #allocation1 [shape = 'u32[144,128]{1,0:T(1,128)}', space=vmem, size = 0x12000, scoped, tag = 'internal scratch']
  %s0 = inlined_call_operand.vmem [shape: s32[16,1], index: 0, kind: input, shape index: {}]
  %s1 = inlined_call_operand.hbm [shape: f32[840,128], index: 1, kind: input, shape index: {}]
  %s2 = inlined_call_operand.vmem [shape: f32[16,128], index: 2, kind: output, shape index: {}]
  %s3 = sld [smem:[#allocation0]]
  $region22: #{model_forward.1} parent=0
    _
  %s5 = ssub.s32 1, %s3
  %s6 = scalar_select 0, %s5, %s3
  $region1: #{model_forward.1} parent=0
    #allocation2 [shape = 'u8[430080]{0}', space=vmem, size = 0x69000, scoped, tag = 'input window, operand 1, single buffered']
    #allocation3 [shape = 's32[1]{0}', space=sflag, size = 0x4, scoped, tag = 'scoped memory for model_forward.1']
    %7 = vsyncpa [#allocation3], 0
    // Predicated region
    $region2: #{model_forward.1} parent=1 // pred_check
      _
    $region3: #{model_forward.1} parent=1 // pred_check_branch
      %9 = sbr.rel (0) target = $region5
    $region4: #{model_forward.1} parent=1 // pred_region
      _
    $region5: #{model_forward.1} parent=1 // pred_fallthru
      _
    // Predicated region
    $region6: #{model_forward.1} parent=1 // pred_check
      _
    $region7: #{model_forward.1} parent=1 // pred_check_branch
      %11 = sbr.rel (0) target = $region9
    $region8: #{model_forward.1} parent=1 // pred_region
      %s13 = ssub.s32 13440, 13440
      %14 = vsyncadd [#allocation3], %s13
      %s15 = sshll.u32 [#allocation2], 4
      %s16 = int_to_ptr.vmem [resolvable:$true] %s15
      %21 = dma.hbm_to_vmem [thread:$0]  %s1, 13440, %s16, [#allocation3], 128, 128, 8
    $region9: #{model_forward.1} parent=1 // pred_fallthru
      _
    // Predicated region
    $region10: #{model_forward.1} parent=1 // pred_check
      _
    $region11: #{model_forward.1} parent=1 // pred_check_branch
      %23 = sbr.rel (0) target = $region13
    $region12: #{model_forward.1} parent=1 // pred_region
      %24 = dma.done [#allocation3], 13440
    $region13: #{model_forward.1} parent=1 // pred_fallthru
      _
    %v25 = vld [vmem:[%s0] sm:$0xff]
    %v26 = vld [vmem:[%s0 + $0x8] sm:$0xff]
    %v27 = vlaneseq
    %v28 = vand.u32 %v27, 127
    %29 = vset.pattern.permute.xlu0 0
    %30 = vperm.xlu0 %29, %v25
    %v31 = vpop.permute.xlu0 %30
    %32 = vset.pattern.permute.xlu0 0
    %33 = vperm.xlu0 %32, %v26
    %v34 = vpop.permute.xlu0 %33
    %vm35 = vcmp.eq.s32.totalorder %v31, %v28
    %vm36 = vcmp.eq.s32.totalorder %v34, %v28
    %v37 = vsel %vm35, 1, 0
    %v38 = vsel %vm36, 1, 0
    %v39 = vcvt.s32.f32 %v37
    %v40 = vcvt.s32.f32 %v38
    %v41 = vld [vmem:[#allocation2] sm:$0xff]
    %v42 = vld [vmem:[#allocation2 + $0x8] sm:$0xff]
    %v43 = vld [vmem:[#allocation2 + $0x10] sm:$0xff]
    %v44 = vld [vmem:[#allocation2 + $0x18] sm:$0xff]
    %v45 = vld [vmem:[#allocation2 + $0x20] sm:$0xff]
    %v46 = vld [vmem:[#allocation2 + $0x28] sm:$0xff]
    %v47 = vld [vmem:[#allocation2 + $0x30] sm:$0xff]
    %v48 = vld [vmem:[#allocation2 + $0x38] sm:$0xff]
    %v49 = vld [vmem:[#allocation2 + $0x40] sm:$0xff]
    %v50 = vld [vmem:[#allocation2 + $0x48] sm:$0xff]
    %vm51 = vcmask 523264
    %v53 = vsel %vm51, %v39, 0
    %v56 = vsel %vm51, %v40, 0
    %58 = vmatprep.subr.mxu0 0.0
    %59 = vmatpush1.msra.mxu0 %v41
    %60 = vmatprep.subr.mxu0 0.0
    %61 = vmatpush1.msra.mxu0 %v42
    %62 = vmatprep.subr.mxu0 0.0
    %63 = vmatpush1.msra.mxu0 %v43
    %64 = vmatprep.subr.mxu0 0.0
    %65 = vmatpush1.msra.mxu0 %v44
    %66 = vmatprep.subr.mxu0 0.0
    %67 = vmatpush1.msra.mxu0 %v45
    %68 = vmatprep.subr.mxu0 0.0
    %69 = vmatpush1.msra.mxu0 %v46
    %70 = vmatprep.subr.mxu0 0.0
    %71 = vmatpush1.msra.mxu0 %v47
    %72 = vmatprep.subr.mxu0 0.0
    %73 = vmatpush1.msra.mxu0 %v48
    %74 = vmatprep.subr.mxu0 0.0
    %75 = vmatpush1.msra.mxu0 0.0
    %76 = vmatprep.subr.mxu0 0.0
    %77 = vmatpush1.msra.mxu0 0.0
    %78 = vmatprep.subr.mxu0 0.0
    %79 = vmatpush1.msra.mxu0 0.0
    %80 = vmatprep.subr.mxu0 0.0
    %81 = vmatpush1.msra.mxu0 0.0
    %82 = vmatprep.subr.mxu0 0.0
    %83 = vmatpush1.msra.mxu0 0.0
    %84 = vmatprep.subr.mxu0 0.0
    %85 = vmatpush1.msra.mxu0 0.0
    %86 = vmatprep.subr.mxu0 0.0
    %87 = vmatpush1.msra.mxu0 0.0
    %88 = vmatprep.subr.mxu0 0.0
    %89 = vmatpush1.msra.mxu0 0.0
    %90 = vmatprep.subr.mxu0 0.0
    %91 = vmatpush1.msra.mxu0 0.0
    %92 = vmatprep.subr.mxu0 0.0
    %93 = vmatpush1.msra.mxu0 0.0
    %94 = vmatprep.subr.mxu0 0.0
    %95 = vmatpush1.msra.mxu0 0.0
    %96 = vmatprep.subr.mxu0 0.0
    %97 = vmatpush1.msra.mxu0 0.0
    %98 = vmatprep.subr.mxu0 0.0
    %99 = vmatpush1.msra.mxu0 0.0
    %100 = vmatprep.subr.mxu0 0.0
    %101 = vmatpush1.msra.mxu0 0.0
    %102 = vmatprep.subr.mxu0 0.0
    %103 = vmatpush1.msra.mxu0 0.0
    %104 = vmatprep.subr.mxu0 0.0
    %105 = vmatpush1.msra.mxu0 0.0
    %106 = vmatprep.subr.mxu0 0.0
    %107 = vmatpush1.msra.mxu0 0.0
    %108 = vmatprep.subr.mxu0 0.0
    %109 = vmatpush1.msra.mxu0 0.0
    %110 = vmatprep.subr.mxu0 0.0
    %111 = vmatpush1.msra.mxu0 0.0
    %112 = vmatprep.subr.mxu0 0.0
    %113 = vmatpush1.msra.mxu0 0.0
    %114 = vmatprep.subr.mxu0 0.0
    %115 = vmatpush1.msra.mxu0 0.0
    %116 = vmatprep.subr.mxu0 0.0
    %117 = vmatpush1.msra.mxu0 0.0
    %118 = vmatprep.subr.mxu0 0.0
    %119 = vmatpush1.msra.mxu0 0.0
    %120 = vmatprep.subr.mxu0 0.0
    %121 = vmatpush1.msra.mxu0 0.0
    %122 = vmatprep.mubr.f32.mxu0 0.0
    %123 = vmatmul.mubr.f32.gmra.mrb[0].mxu0 %v53
    %v124 = vpop.f32.mrb[0].mxu0
    %v125 = vadd.f32 %v49, %v124
    %v126 = vpop.f32.mrb[0].mxu0
    %127 = vmatprep.mubr.f32.mxu0 0.0
    %128 = vmatmul.mubr.f32.gmra.mrb[0].mxu0 %v56
    %v129 = vpop.f32.mrb[0].mxu0
    %v130 = vadd.f32 %v50, %v129
    %v131 = vpop.f32.mrb[0].mxu0
    %132 = vdwg.mxu0
    %v133 = vld [vmem:[#allocation2 + $0x50] sm:$0xff]
    %v134 = vld [vmem:[#allocation2 + $0x58] sm:$0xff]
    %v135 = vld [vmem:[#allocation2 + $0x60] sm:$0xff]
    %v136 = vld [vmem:[#allocation2 + $0x68] sm:$0xff]
    %v137 = vld [vmem:[#allocation2 + $0x70] sm:$0xff]
    %v138 = vld [vmem:[#allocation2 + $0x78] sm:$0xff]
    %v139 = vld [vmem:[#allocation2 + $0x80] sm:$0xff]
    %v140 = vld [vmem:[#allocation2 + $0x88] sm:$0xff]
    %v141 = vld [vmem:[#allocation2 + $0x90] sm:$0xff]
    %v142 = vld [vmem:[#allocation2 + $0x98] sm:$0xff]
    %v143 = vld [vmem:[#allocation2 + $0xa0] sm:$0xff]
    %v144 = vld [vmem:[#allocation2 + $0xa8] sm:$0xff]
    %v145 = vld [vmem:[#allocation2 + $0xb0] sm:$0xff]
    %v146 = vld [vmem:[#allocation2 + $0xb8] sm:$0xff]
    %v147 = vld [vmem:[#allocation2 + $0xc0] sm:$0xff]
    %v148 = vld [vmem:[#allocation2 + $0xc8] sm:$0xff]
    %v149 = vld [vmem:[#allocation2 + $0x108] sm:$0xff]
    %v150 = vld [vmem:[#allocation2 + $0x110] sm:$0xff]
    %v151 = vld [vmem:[#allocation2 + $0x118] sm:$0xff]
    %v152 = vld [vmem:[#allocation2 + $0x120] sm:$0xff]
    %v153 = vld [vmem:[#allocation2 + $0x128] sm:$0x1]
    %v154 = vlaneseq
    %v155 = vshrl.u32 %v154, 7
    %v156 = vsub.s32 0, %v155
    %v157 = vrot.slane %v153, %v156
    %vm158 = vcmask 261120
    %v160 = vsel %vm158, %v125, 0
    %v163 = vsel %vm158, %v130, 0
    %165 = vmatprep.subr.mxu0 0.0
    %166 = vmatpush1.msra.mxu0 %v149
    %167 = vmatprep.subr.mxu0 0.0
    %168 = vmatpush1.msra.mxu0 %v150
    %169 = vmatprep.subr.mxu0 0.0
    %170 = vmatpush1.msra.mxu0 %v151
    %171 = vmatprep.subr.mxu0 0.0
    %172 = vmatpush1.msra.mxu0 %v152
    %173 = vmatprep.subr.mxu0 0.0
    %174 = vmatpush1.msra.mxu0 0.0
    %175 = vmatprep.subr.mxu0 0.0
    %176 = vmatpush1.msra.mxu0 0.0
    %177 = vmatprep.subr.mxu0 0.0
    %178 = vmatpush1.msra.mxu0 0.0
    %179 = vmatprep.subr.mxu0 0.0
    %180 = vmatpush1.msra.mxu0 0.0
    %181 = vmatprep.subr.mxu0 0.0
    %182 = vmatpush1.msra.mxu0 0.0
    %183 = vmatprep.subr.mxu0 0.0
    %184 = vmatpush1.msra.mxu0 0.0
    %185 = vmatprep.subr.mxu0 0.0
    %186 = vmatpush1.msra.mxu0 0.0
    %187 = vmatprep.subr.mxu0 0.0
    %188 = vmatpush1.msra.mxu0 0.0
    %189 = vmatprep.subr.mxu0 0.0
    %190 = vmatpush1.msra.mxu0 0.0
    %191 = vmatprep.subr.mxu0 0.0
    %192 = vmatpush1.msra.mxu0 0.0
    %193 = vmatprep.subr.mxu0 0.0
    %194 = vmatpush1.msra.mxu0 0.0
    %195 = vmatprep.subr.mxu0 0.0
    %196 = vmatpush1.msra.mxu0 0.0
    %197 = vmatprep.subr.mxu0 0.0
    %198 = vmatpush1.msra.mxu0 0.0
    %199 = vmatprep.subr.mxu0 0.0
    %200 = vmatpush1.msra.mxu0 0.0
    %201 = vmatprep.subr.mxu0 0.0
    %202 = vmatpush1.msra.mxu0 0.0
    %203 = vmatprep.subr.mxu0 0.0
    %204 = vmatpush1.msra.mxu0 0.0
    %205 = vmatprep.subr.mxu0 0.0
    %206 = vmatpush1.msra.mxu0 0.0
    %207 = vmatprep.subr.mxu0 0.0
    %208 = vmatpush1.msra.mxu0 0.0
    %209 = vmatprep.subr.mxu0 0.0
    %210 = vmatpush1.msra.mxu0 0.0
    %211 = vmatprep.subr.mxu0 0.0
    %212 = vmatpush1.msra.mxu0 0.0
    %213 = vmatprep.subr.mxu0 0.0
    %214 = vmatpush1.msra.mxu0 0.0
    %215 = vmatprep.subr.mxu0 0.0
    %216 = vmatpush1.msra.mxu0 0.0
    %217 = vmatprep.subr.mxu0 0.0
    %218 = vmatpush1.msra.mxu0 0.0
    %219 = vmatprep.subr.mxu0 0.0
    %220 = vmatpush1.msra.mxu0 0.0
    %221 = vmatprep.subr.mxu0 0.0
    %222 = vmatpush1.msra.mxu0 0.0
    %223 = vmatprep.subr.mxu0 0.0
    %224 = vmatpush1.msra.mxu0 0.0
    %225 = vmatprep.subr.mxu0 0.0
    %226 = vmatpush1.msra.mxu0 0.0
    %227 = vmatprep.subr.mxu0 0.0
    %228 = vmatpush1.msra.mxu0 0.0
    %229 = vmatprep.mubr.f32.mxu0 0.0
    %230 = vmatmul.mubr.f32.gmra.mrb[0].mxu0 %v160
    %v231 = vpop.f32.mrb[0].mxu0
    %v232 = vadd.f32 %v157, %v231
    %v233 = vpop.f32.mrb[0].mxu0
    %234 = vmatprep.mubr.f32.mxu0 0.0
    %235 = vmatmul.mubr.f32.gmra.mrb[0].mxu0 %v163
    %v236 = vpop.f32.mrb[0].mxu0
    %v237 = vadd.f32 %v157, %v236
    %v238 = vpop.f32.mrb[0].mxu0
    %239 = vdwg.mxu0
    %v240 = vmul.f32 %v232, %v141
    %v241 = vmul.f32 %v237, %v142
    %v242 = vmul.f32 %v232, %v143
    %v243 = vmul.f32 %v237, %v144
    %v244 = vmul.f32 %v232, %v145
    %v245 = vmul.f32 %v237, %v146
    %v246 = vmul.f32 %v232, %v147
    %v247 = vmul.f32 %v237, %v148
    %250 = vrot.lane.b32.xlu0 %v232, 96
    %v251 = vpop.permute.xlu0 %250
    %252 = vrot.lane.b32.xlu0 %v237, 96
    %v253 = vpop.permute.xlu0 %252
    %v255 = vsel %vm158, %v240, 0
    %v258 = vsel %vm158, %v241, 0
    %v261 = vsel %vm158, %v242, 0
    %v264 = vsel %vm158, %v243, 0
    %v267 = vsel %vm158, %v244, 0
    %v270 = vsel %vm158, %v245, 0
    %v273 = vsel %vm158, %v246, 0
    %v276 = vsel %vm158, %v247, 0
    %v278 = vsel %vm158, %v251, 0
    %v280 = vsel %vm158, %v253, 0
    %282 = vmatprep.subr.mxu0 0.0
    %283 = vmatpush1.xpose.msra.mxu0 %v278
    %284 = vmatprep.subr.mxu0 0.0
    %285 = vmatpush1.xpose.msra.mxu0 %v280
    %286 = vmatprep.subr.mxu0 0.0
    %287 = vmatpush1.xpose.msra.mxu0 0.0
    %288 = vmatprep.subr.mxu0 0.0
    %289 = vmatpush1.xpose.msra.mxu0 0.0
    %290 = vmatprep.subr.mxu0 0.0
    %291 = vmatpush1.xpose.msra.mxu0 0.0
    %292 = vmatprep.subr.mxu0 0.0
    %293 = vmatpush1.xpose.msra.mxu0 0.0
    %294 = vmatprep.subr.mxu0 0.0
    %295 = vmatpush1.xpose.msra.mxu0 0.0
    %296 = vmatprep.subr.mxu0 0.0
    %297 = vmatpush1.xpose.msra.mxu0 0.0
    %298 = vmatprep.subr.mxu0 0.0
    %299 = vmatpush1.xpose.msra.mxu0 0.0
    %300 = vmatprep.subr.mxu0 0.0
    %301 = vmatpush1.xpose.msra.mxu0 0.0
    %302 = vmatprep.subr.mxu0 0.0
    %303 = vmatpush1.xpose.msra.mxu0 0.0
    %304 = vmatprep.subr.mxu0 0.0
    %305 = vmatpush1.xpose.msra.mxu0 0.0
    %306 = vmatprep.subr.mxu0 0.0
    %307 = vmatpush1.xpose.msra.mxu0 0.0
    %308 = vmatprep.subr.mxu0 0.0
    %309 = vmatpush1.xpose.msra.mxu0 0.0
    %310 = vmatprep.subr.mxu0 0.0
    %311 = vmatpush1.xpose.msra.mxu0 0.0
    %312 = vmatprep.subr.mxu0 0.0
    %313 = vmatpush1.xpose.msra.mxu0 0.0
    %314 = vmatprep.subr.mxu0 0.0
    %315 = vmatpush1.xpose.msra.mxu0 0.0
    %316 = vmatprep.subr.mxu0 0.0
    %317 = vmatpush1.xpose.msra.mxu0 0.0
    %318 = vmatprep.subr.mxu0 0.0
    %319 = vmatpush1.xpose.msra.mxu0 0.0
    %320 = vmatprep.subr.mxu0 0.0
    %321 = vmatpush1.xpose.msra.mxu0 0.0
    %322 = vmatprep.subr.mxu0 0.0
    %323 = vmatpush1.xpose.msra.mxu0 0.0
    %324 = vmatprep.subr.mxu0 0.0
    %325 = vmatpush1.xpose.msra.mxu0 0.0
    %326 = vmatprep.subr.mxu0 0.0
    %327 = vmatpush1.xpose.msra.mxu0 0.0
    %328 = vmatprep.subr.mxu0 0.0
    %329 = vmatpush1.xpose.msra.mxu0 0.0
    %330 = vmatprep.subr.mxu0 0.0
    %331 = vmatpush1.xpose.msra.mxu0 0.0
    %332 = vmatprep.subr.mxu0 0.0
    %333 = vmatpush1.xpose.msra.mxu0 0.0
    %334 = vmatprep.subr.mxu0 0.0
    %335 = vmatpush1.xpose.msra.mxu0 0.0
    %336 = vmatprep.subr.mxu0 0.0
    %337 = vmatpush1.xpose.msra.mxu0 0.0
    %338 = vmatprep.subr.mxu0 0.0
    %339 = vmatpush1.xpose.msra.mxu0 0.0
    %340 = vmatprep.subr.mxu0 0.0
    %341 = vmatpush1.xpose.msra.mxu0 0.0
    %342 = vmatprep.subr.mxu0 0.0
    %343 = vmatpush1.xpose.msra.mxu0 0.0
    %344 = vmatprep.subr.mxu0 0.0
    %345 = vmatpush1.xpose.msra.mxu0 0.0
    %346 = vmatprep.mubr.f32.mxu0 0.0
    %347 = vmatmul.mubr.f32.gmra.mrb[0].mxu0 %v255
    %v348 = vpop.f32.mrb[0].mxu0
    %v349 = vadd.f32 %v133, %v348
    %v350 = vpop.f32.mrb[0].mxu0
    %351 = vmatprep.mubr.f32.mxu0 0.0
    %352 = vmatmul.mubr.f32.gmra.mrb[0].mxu0 %v258
    %v353 = vpop.f32.mrb[0].mxu0
    %v354 = vadd.f32 %v134, %v353
    %v355 = vpop.f32.mrb[0].mxu0
    %356 = vmatprep.mubr.f32.mxu0 0.0
    %357 = vmatmul.mubr.f32.gmra.mrb[0].mxu0 %v261
    %v358 = vpop.f32.mrb[0].mxu0
    %v359 = vadd.f32 %v135, %v358
    %v360 = vpop.f32.mrb[0].mxu0
    %361 = vmatprep.mubr.f32.mxu0 0.0
    %362 = vmatmul.mubr.f32.gmra.mrb[0].mxu0 %v264
    %v363 = vpop.f32.mrb[0].mxu0
    %v364 = vadd.f32 %v136, %v363
    %v365 = vpop.f32.mrb[0].mxu0
    %366 = vmatprep.mubr.f32.mxu0 0.0
    %367 = vmatmul.mubr.f32.gmra.mrb[0].mxu0 %v267
    %v368 = vpop.f32.mrb[0].mxu0
    %v369 = vadd.f32 %v137, %v368
    %v370 = vpop.f32.mrb[0].mxu0
    %371 = vmatprep.mubr.f32.mxu0 0.0
    %372 = vmatmul.mubr.f32.gmra.mrb[0].mxu0 %v270
    %v373 = vpop.f32.mrb[0].mxu0
    %v374 = vadd.f32 %v138, %v373
    %v375 = vpop.f32.mrb[0].mxu0
    %376 = vmatprep.mubr.f32.mxu0 0.0
    %377 = vmatmul.mubr.f32.gmra.mrb[0].mxu0 %v273
    %v378 = vpop.f32.mrb[0].mxu0
    %v379 = vadd.f32 %v139, %v378
    %v380 = vpop.f32.mrb[0].mxu0
    %381 = vmatprep.mubr.f32.mxu0 0.0
    %382 = vmatmul.mubr.f32.gmra.mrb[0].mxu0 %v276
    %v383 = vpop.f32.mrb[0].mxu0
    %v384 = vadd.f32 %v140, %v383
    %v385 = vpop.f32.mrb[0].mxu0
    %386 = vdwg.mxu0
    %vm387 = vcmask 130048
    %v388 = vsel %vm387, %v349, -inf
    %389 = vmax.xlane.f32.xlu0 %v388
    %v390 = vpop.xlane.xlu0 %389
    %v391 = vsel %vm387, %v354, -inf
    %392 = vmax.xlane.f32.xlu0 %v391
    %v393 = vpop.xlane.xlu0 %392
    %v394 = vsel %vm387, %v359, -inf
    %395 = vmax.xlane.f32.xlu0 %v394
    %v396 = vpop.xlane.xlu0 %395
    %v397 = vsel %vm387, %v364, -inf
    %398 = vmax.xlane.f32.xlu0 %v397
    %v399 = vpop.xlane.xlu0 %398
    %v400 = vsel %vm387, %v369, -inf
    %401 = vmax.xlane.f32.xlu0 %v400
    %v402 = vpop.xlane.xlu0 %401
    %v403 = vsel %vm387, %v374, -inf
    %404 = vmax.xlane.f32.xlu0 %v403
    %v405 = vpop.xlane.xlu0 %404
    %v406 = vsel %vm387, %v379, -inf
    %407 = vmax.xlane.f32.xlu0 %v406
    %v408 = vpop.xlane.xlu0 %407
    %v409 = vsel %vm387, %v384, -inf
    %410 = vmax.xlane.f32.xlu0 %v409
    %v411 = vpop.xlane.xlu0 %410
    %v412 = vsub.f32 %v349, %v390
    %v413 = vsub.f32 %v354, %v393
    %v414 = vsub.f32 %v359, %v396
    %v415 = vsub.f32 %v364, %v399
    %v416 = vsub.f32 %v369, %v402
    %v417 = vsub.f32 %v374, %v405
    %v418 = vsub.f32 %v379, %v408
    %v419 = vsub.f32 %v384, %v411
    %v420 = vmul.f32 %v412, 1.442695
    %v421 = vpow.pop %v420
    %v422 = vmul.f32 %v413, 1.442695
    %v423 = vpow.pop %v422
    %v424 = vmul.f32 %v414, 1.442695
    %v425 = vpow.pop %v424
    %v426 = vmul.f32 %v415, 1.442695
    %v427 = vpow.pop %v426
    %v428 = vmul.f32 %v416, 1.442695
    %v429 = vpow.pop %v428
    %v430 = vmul.f32 %v417, 1.442695
    %v431 = vpow.pop %v430
    %v432 = vmul.f32 %v418, 1.442695
    %v433 = vpow.pop %v432
    %v434 = vmul.f32 %v419, 1.442695
    %v435 = vpow.pop %v434
    %v436 = vsel %vm387, %v421, 0.0
    %437 = vadd.xlane.f32.xlu0 %v436
    %v438 = vpop.xlane.xlu0 %437
    %v439 = vsel %vm387, %v423, 0.0
    %440 = vadd.xlane.f32.xlu0 %v439
    %v441 = vpop.xlane.xlu0 %440
    %v442 = vsel %vm387, %v425, 0.0
    %443 = vadd.xlane.f32.xlu0 %v442
    %v444 = vpop.xlane.xlu0 %443
    %v445 = vsel %vm387, %v427, 0.0
    %446 = vadd.xlane.f32.xlu0 %v445
    %v447 = vpop.xlane.xlu0 %446
    %v448 = vsel %vm387, %v429, 0.0
    %449 = vadd.xlane.f32.xlu0 %v448
    %v450 = vpop.xlane.xlu0 %449
    %v451 = vsel %vm387, %v431, 0.0
    %452 = vadd.xlane.f32.xlu0 %v451
    %v453 = vpop.xlane.xlu0 %452
    %v454 = vsel %vm387, %v433, 0.0
    %455 = vadd.xlane.f32.xlu0 %v454
    %v456 = vpop.xlane.xlu0 %455
    %v457 = vsel %vm387, %v435, 0.0
    %458 = vadd.xlane.f32.xlu0 %v457
    %v459 = vpop.xlane.xlu0 %458
    %v460 = vrcp.pop %v438
    %v461 = vrcp.pop %v441
    %v462 = vrcp.pop %v444
    %v463 = vrcp.pop %v447
    %v464 = vrcp.pop %v450
    %v465 = vrcp.pop %v453
    %v466 = vrcp.pop %v456
    %v467 = vrcp.pop %v459
    %v468 = vmul.f32 %v421, %v460
    %v469 = vmul.f32 %v423, %v461
    %v470 = vmul.f32 %v425, %v462
    %v471 = vmul.f32 %v427, %v463
    %v472 = vmul.f32 %v429, %v464
    %v473 = vmul.f32 %v431, %v465
    %v474 = vmul.f32 %v433, %v466
    %v475 = vmul.f32 %v435, %v467
    %476 = vrot.lane.b32.xlu0 %v232, 64
    %v477 = vpop.permute.xlu0 %476
    %478 = vrot.lane.b32.xlu0 %v237, 64
    %v479 = vpop.permute.xlu0 %478
    %v483 = vsel %vm387, %v468, 0
    %v486 = vsel %vm387, %v469, 0
    %v489 = vsel %vm387, %v470, 0
    %v492 = vsel %vm387, %v471, 0
    %v495 = vsel %vm387, %v472, 0
    %v498 = vsel %vm387, %v473, 0
    %v501 = vsel %vm387, %v474, 0
    %v504 = vsel %vm387, %v475, 0
    %506 = vmatprep.subr.mxu0 0.0
    %507 = vmatpush1.msra.mxu0 %v477
    %508 = vmatprep.subr.mxu0 0.0
    %509 = vmatpush1.msra.mxu0 %v479
    %510 = vmatprep.subr.mxu0 0.0
    %511 = vmatpush1.msra.mxu0 0.0
    %512 = vmatprep.subr.mxu0 0.0
    %513 = vmatpush1.msra.mxu0 0.0
    %514 = vmatprep.subr.mxu0 0.0
    %515 = vmatpush1.msra.mxu0 0.0
    %516 = vmatprep.subr.mxu0 0.0
    %517 = vmatpush1.msra.mxu0 0.0
    %518 = vmatprep.subr.mxu0 0.0
    %519 = vmatpush1.msra.mxu0 0.0
    %520 = vmatprep.subr.mxu0 0.0
    %521 = vmatpush1.msra.mxu0 0.0
    %522 = vmatprep.subr.mxu0 0.0
    %523 = vmatpush1.msra.mxu0 0.0
    %524 = vmatprep.subr.mxu0 0.0
    %525 = vmatpush1.msra.mxu0 0.0
    %526 = vmatprep.subr.mxu0 0.0
    %527 = vmatpush1.msra.mxu0 0.0
    %528 = vmatprep.subr.mxu0 0.0
    %529 = vmatpush1.msra.mxu0 0.0
    %530 = vmatprep.subr.mxu0 0.0
    %531 = vmatpush1.msra.mxu0 0.0
    %532 = vmatprep.subr.mxu0 0.0
    %533 = vmatpush1.msra.mxu0 0.0
    %534 = vmatprep.subr.mxu0 0.0
    %535 = vmatpush1.msra.mxu0 0.0
    %536 = vmatprep.subr.mxu0 0.0
    %537 = vmatpush1.msra.mxu0 0.0
    %538 = vmatprep.subr.mxu0 0.0
    %539 = vmatpush1.msra.mxu0 0.0
    %540 = vmatprep.subr.mxu0 0.0
    %541 = vmatpush1.msra.mxu0 0.0
    %542 = vmatprep.subr.mxu0 0.0
    %543 = vmatpush1.msra.mxu0 0.0
    %544 = vmatprep.subr.mxu0 0.0
    %545 = vmatpush1.msra.mxu0 0.0
    %546 = vmatprep.subr.mxu0 0.0
    %547 = vmatpush1.msra.mxu0 0.0
    %548 = vmatprep.subr.mxu0 0.0
    %549 = vmatpush1.msra.mxu0 0.0
    %550 = vmatprep.subr.mxu0 0.0
    %551 = vmatpush1.msra.mxu0 0.0
    %552 = vmatprep.subr.mxu0 0.0
    %553 = vmatpush1.msra.mxu0 0.0
    %554 = vmatprep.subr.mxu0 0.0
    %555 = vmatpush1.msra.mxu0 0.0
    %556 = vmatprep.subr.mxu0 0.0
    %557 = vmatpush1.msra.mxu0 0.0
    %558 = vmatprep.subr.mxu0 0.0
    %559 = vmatpush1.msra.mxu0 0.0
    %560 = vmatprep.subr.mxu0 0.0
    %561 = vmatpush1.msra.mxu0 0.0
    %562 = vmatprep.subr.mxu0 0.0
    %563 = vmatpush1.msra.mxu0 0.0
    %564 = vmatprep.subr.mxu0 0.0
    %565 = vmatpush1.msra.mxu0 0.0
    %566 = vmatprep.subr.mxu0 0.0
    %567 = vmatpush1.msra.mxu0 0.0
    %568 = vmatprep.subr.mxu0 0.0
    %569 = vmatpush1.msra.mxu0 0.0
    %570 = vmatprep.mubr.f32.mxu0 0.0
    %571 = vmatmul.mubr.f32.gmra.mrb[0].mxu0 %v483
    %v572 = vpop.f32.mrb[0].mxu0
    %v573 = vadd.f32 0.0, %v572
    %v574 = vpop.f32.mrb[0].mxu0
    %575 = vmatprep.mubr.f32.mxu0 0.0
    %576 = vmatmul.mubr.f32.gmra.mrb[0].mxu0 %v486
    %v577 = vpop.f32.mrb[0].mxu0
    %v578 = vadd.f32 0.0, %v577
    %v579 = vpop.f32.mrb[0].mxu0
    %580 = vmatprep.mubr.f32.mxu0 0.0
    %581 = vmatmul.mubr.f32.gmra.mrb[0].mxu0 %v489
    %v582 = vpop.f32.mrb[0].mxu0
    %v583 = vadd.f32 0.0, %v582
    %v584 = vpop.f32.mrb[0].mxu0
    %585 = vmatprep.mubr.f32.mxu0 0.0
    %586 = vmatmul.mubr.f32.gmra.mrb[0].mxu0 %v492
    %v587 = vpop.f32.mrb[0].mxu0
    %v588 = vadd.f32 0.0, %v587
    %v589 = vpop.f32.mrb[0].mxu0
    %590 = vmatprep.mubr.f32.mxu0 0.0
    %591 = vmatmul.mubr.f32.gmra.mrb[0].mxu0 %v495
    %v592 = vpop.f32.mrb[0].mxu0
    %v593 = vadd.f32 0.0, %v592
    %v594 = vpop.f32.mrb[0].mxu0
    %595 = vmatprep.mubr.f32.mxu0 0.0
    %596 = vmatmul.mubr.f32.gmra.mrb[0].mxu0 %v498
    %v597 = vpop.f32.mrb[0].mxu0
    %v598 = vadd.f32 0.0, %v597
    %v599 = vpop.f32.mrb[0].mxu0
    %600 = vmatprep.mubr.f32.mxu0 0.0
    %601 = vmatmul.mubr.f32.gmra.mrb[0].mxu0 %v501
    %v602 = vpop.f32.mrb[0].mxu0
    %v603 = vadd.f32 0.0, %v602
    %v604 = vpop.f32.mrb[0].mxu0
    %605 = vmatprep.mubr.f32.mxu0 0.0
    %606 = vmatmul.mubr.f32.gmra.mrb[0].mxu0 %v504
    %v607 = vpop.f32.mrb[0].mxu0
    %v608 = vadd.f32 0.0, %v607
    %v609 = vpop.f32.mrb[0].mxu0
    %610 = vdwg.mxu0
    %v611 = vmul.f32 %v573, %v141
    %v612 = vmul.f32 %v578, %v142
    %v613 = vmul.f32 %v583, %v143
    %v614 = vmul.f32 %v588, %v144
    %v615 = vmul.f32 %v593, %v145
    %v616 = vmul.f32 %v598, %v146
    %v617 = vmul.f32 %v603, %v147
    %v618 = vmul.f32 %v608, %v148
    %v619 = vadd.f32 %v611, %v613
    %v620 = vadd.f32 %v612, %v614
    %v621 = vadd.f32 %v619, %v615
    %v622 = vadd.f32 %v620, %v616
    %v623 = vadd.f32 %v621, %v617
    %v624 = vadd.f32 %v622, %v618
    %v625 = vld [vmem:[#allocation2 + $0x130] sm:$0xff]
    %v626 = vld [vmem:[#allocation2 + $0x138] sm:$0xff]
    %v627 = vld [vmem:[#allocation2 + $0x140] sm:$0xff]
    %v628 = vld [vmem:[#allocation2 + $0x148] sm:$0xff]
    %v629 = vld [vmem:[#allocation2 + $0x150] sm:$0x1]
    %v630 = vlaneseq
    %v631 = vshrl.u32 %v630, 7
    %v632 = vsub.s32 0, %v631
    %v633 = vrot.slane %v629, %v632
    %v635 = vsel %vm158, %v623, 0
    %v638 = vsel %vm158, %v624, 0
    %640 = vmatprep.subr.mxu0 0.0
    %641 = vmatpush1.msra.mxu0 %v625
    %642 = vmatprep.subr.mxu0 0.0
    %643 = vmatpush1.msra.mxu0 %v626
    %644 = vmatprep.subr.mxu0 0.0
    %645 = vmatpush1.msra.mxu0 %v627
    %646 = vmatprep.subr.mxu0 0.0
    %647 = vmatpush1.msra.mxu0 %v628
    %648 = vmatprep.subr.mxu0 0.0
    %649 = vmatpush1.msra.mxu0 0.0
    %650 = vmatprep.subr.mxu0 0.0
    %651 = vmatpush1.msra.mxu0 0.0
    %652 = vmatprep.subr.mxu0 0.0
    %653 = vmatpush1.msra.mxu0 0.0
    %654 = vmatprep.subr.mxu0 0.0
    %655 = vmatpush1.msra.mxu0 0.0
    %656 = vmatprep.subr.mxu0 0.0
    %657 = vmatpush1.msra.mxu0 0.0
    %658 = vmatprep.subr.mxu0 0.0
    %659 = vmatpush1.msra.mxu0 0.0
    %660 = vmatprep.subr.mxu0 0.0
    %661 = vmatpush1.msra.mxu0 0.0
    %662 = vmatprep.subr.mxu0 0.0
    %663 = vmatpush1.msra.mxu0 0.0
    %664 = vmatprep.subr.mxu0 0.0
    %665 = vmatpush1.msra.mxu0 0.0
    %666 = vmatprep.subr.mxu0 0.0
    %667 = vmatpush1.msra.mxu0 0.0
    %668 = vmatprep.subr.mxu0 0.0
    %669 = vmatpush1.msra.mxu0 0.0
    %670 = vmatprep.subr.mxu0 0.0
    %671 = vmatpush1.msra.mxu0 0.0
    %672 = vmatprep.subr.mxu0 0.0
    %673 = vmatpush1.msra.mxu0 0.0
    %674 = vmatprep.subr.mxu0 0.0
    %675 = vmatpush1.msra.mxu0 0.0
    %676 = vmatprep.subr.mxu0 0.0
    %677 = vmatpush1.msra.mxu0 0.0
    %678 = vmatprep.subr.mxu0 0.0
    %679 = vmatpush1.msra.mxu0 0.0
    %680 = vmatprep.subr.mxu0 0.0
    %681 = vmatpush1.msra.mxu0 0.0
    %682 = vmatprep.subr.mxu0 0.0
    %683 = vmatpush1.msra.mxu0 0.0
    %684 = vmatprep.subr.mxu0 0.0
    %685 = vmatpush1.msra.mxu0 0.0
    %686 = vmatprep.subr.mxu0 0.0
    %687 = vmatpush1.msra.mxu0 0.0
    %688 = vmatprep.subr.mxu0 0.0
    %689 = vmatpush1.msra.mxu0 0.0
    %690 = vmatprep.subr.mxu0 0.0
    %691 = vmatpush1.msra.mxu0 0.0
    %692 = vmatprep.subr.mxu0 0.0
    %693 = vmatpush1.msra.mxu0 0.0
    %694 = vmatprep.subr.mxu0 0.0
    %695 = vmatpush1.msra.mxu0 0.0
    %696 = vmatprep.subr.mxu0 0.0
    %697 = vmatpush1.msra.mxu0 0.0
    %698 = vmatprep.subr.mxu0 0.0
    %699 = vmatpush1.msra.mxu0 0.0
    %700 = vmatprep.subr.mxu0 0.0
    %701 = vmatpush1.msra.mxu0 0.0
    %702 = vmatprep.subr.mxu0 0.0
    %703 = vmatpush1.msra.mxu0 0.0
    %704 = vmatprep.mubr.f32.mxu0 0.0
    %705 = vmatmul.mubr.f32.gmra.mrb[0].mxu0 %v635
    %v706 = vpop.f32.mrb[0].mxu0
    %v707 = vadd.f32 %v633, %v706
    %v708 = vpop.f32.mrb[0].mxu0
    %709 = vmatprep.mubr.f32.mxu0 0.0
    %710 = vmatmul.mubr.f32.gmra.mrb[0].mxu0 %v638
    %v711 = vpop.f32.mrb[0].mxu0
    %v712 = vadd.f32 %v633, %v711
    %v713 = vpop.f32.mrb[0].mxu0
    %714 = vdwg.mxu0
    %v715 = vadd.f32 %v125, %v707
    %v716 = vadd.f32 %v130, %v712
    %v717 = vld [vmem:[#allocation2 + $0x158] sm:$0x1]
    %v718 = vld [vmem:[#allocation2 + $0x160] sm:$0x1]
    %v719 = vsel %vm158, %v715, 0.0
    %720 = vadd.xlane.f32.xlu0 %v719
    %v721 = vpop.xlane.xlu0 %720
    %v722 = vsel %vm158, %v716, 0.0
    %723 = vadd.xlane.f32.xlu0 %v722
    %v724 = vpop.xlane.xlu0 %723
    %v725 = vrcp.pop 32.0
    %v726 = vmul.f32 %v721, %v725
    %v727 = vmul.f32 %v724, %v725
    %v728 = vsub.f32 %v715, %v726
    %v729 = vsub.f32 %v716, %v727
    %v730 = vmul.f32 %v728, %v728
    %v731 = vmul.f32 %v729, %v729
    %v732 = vsel %vm158, %v730, 0.0
    %733 = vadd.xlane.f32.xlu0 %v732
    %v734 = vpop.xlane.xlu0 %733
    %v735 = vsel %vm158, %v731, 0.0
    %736 = vadd.xlane.f32.xlu0 %v735
    %v737 = vpop.xlane.xlu0 %736
    %v738 = vmul.f32 %v734, %v725
    %v739 = vmul.f32 %v737, %v725
    %v740 = vadd.f32 %v738, 1e-05
    %v741 = vadd.f32 %v739, 1e-05
    %v742 = vrsqrt.pop %v740
    %v743 = vrsqrt.pop %v741
    %v744 = vmul.f32 %v728, %v742
    %v745 = vmul.f32 %v729, %v743
    %v746 = vlaneseq
    %v747 = vshrl.u32 %v746, 7
    %v748 = vsub.s32 0, %v747
    %v749 = vrot.slane %v717, %v748
    %v750 = vmul.f32 %v744, %v749
    %v751 = vmul.f32 %v745, %v749
    %v752 = vlaneseq
    %v753 = vshrl.u32 %v752, 7
    %v754 = vsub.s32 0, %v753
    %v755 = vrot.slane %v718, %v754
    %v756 = vadd.f32 %v750, %v755
    %v757 = vadd.f32 %v751, %v755
    %v758 = vld [vmem:[#allocation2 + $0x178] sm:$0xff]
    %v759 = vld [vmem:[#allocation2 + $0x180] sm:$0xff]
    %v760 = vld [vmem:[#allocation2 + $0x188] sm:$0xff]
    %v761 = vld [vmem:[#allocation2 + $0x190] sm:$0xff]
    %v762 = vld [vmem:[#allocation2 + $0x198] sm:$0x1]
    %v763 = vlaneseq
    %v764 = vshrl.u32 %v763, 7
    %v765 = vsub.s32 0, %v764
    %v766 = vrot.slane %v762, %v765
    %v768 = vsel %vm158, %v756, 0
    %v771 = vsel %vm158, %v757, 0
    %773 = vmatprep.subr.mxu0 0.0
    %774 = vmatpush1.msra.mxu0 %v758
    %775 = vmatprep.subr.mxu0 0.0
    %776 = vmatpush1.msra.mxu0 %v759
    %777 = vmatprep.subr.mxu0 0.0
    %778 = vmatpush1.msra.mxu0 %v760
    %779 = vmatprep.subr.mxu0 0.0
    %780 = vmatpush1.msra.mxu0 %v761
    %781 = vmatprep.subr.mxu0 0.0
    %782 = vmatpush1.msra.mxu0 0.0
    %783 = vmatprep.subr.mxu0 0.0
    %784 = vmatpush1.msra.mxu0 0.0
    %785 = vmatprep.subr.mxu0 0.0
    %786 = vmatpush1.msra.mxu0 0.0
    %787 = vmatprep.subr.mxu0 0.0
    %788 = vmatpush1.msra.mxu0 0.0
    %789 = vmatprep.subr.mxu0 0.0
    %790 = vmatpush1.msra.mxu0 0.0
    %791 = vmatprep.subr.mxu0 0.0
    %792 = vmatpush1.msra.mxu0 0.0
    %793 = vmatprep.subr.mxu0 0.0
    %794 = vmatpush1.msra.mxu0 0.0
    %795 = vmatprep.subr.mxu0 0.0
    %796 = vmatpush1.msra.mxu0 0.0
    %797 = vmatprep.subr.mxu0 0.0
    %798 = vmatpush1.msra.mxu0 0.0
    %799 = vmatprep.subr.mxu0 0.0
    %800 = vmatpush1.msra.mxu0 0.0
    %801 = vmatprep.subr.mxu0 0.0
    %802 = vmatpush1.msra.mxu0 0.0
    %803 = vmatprep.subr.mxu0 0.0
    %804 = vmatpush1.msra.mxu0 0.0
    %805 = vmatprep.subr.mxu0 0.0
    %806 = vmatpush1.msra.mxu0 0.0
    %807 = vmatprep.subr.mxu0 0.0
    %808 = vmatpush1.msra.mxu0 0.0
    %809 = vmatprep.subr.mxu0 0.0
    %810 = vmatpush1.msra.mxu0 0.0
    %811 = vmatprep.subr.mxu0 0.0
    %812 = vmatpush1.msra.mxu0 0.0
    %813 = vmatprep.subr.mxu0 0.0
    %814 = vmatpush1.msra.mxu0 0.0
    %815 = vmatprep.subr.mxu0 0.0
    %816 = vmatpush1.msra.mxu0 0.0
    %817 = vmatprep.subr.mxu0 0.0
    %818 = vmatpush1.msra.mxu0 0.0
    %819 = vmatprep.subr.mxu0 0.0
    %820 = vmatpush1.msra.mxu0 0.0
    %821 = vmatprep.subr.mxu0 0.0
    %822 = vmatpush1.msra.mxu0 0.0
    %823 = vmatprep.subr.mxu0 0.0
    %824 = vmatpush1.msra.mxu0 0.0
    %825 = vmatprep.subr.mxu0 0.0
    %826 = vmatpush1.msra.mxu0 0.0
    %827 = vmatprep.subr.mxu0 0.0
    %828 = vmatpush1.msra.mxu0 0.0
    %829 = vmatprep.subr.mxu0 0.0
    %830 = vmatpush1.msra.mxu0 0.0
    %831 = vmatprep.subr.mxu0 0.0
    %832 = vmatpush1.msra.mxu0 0.0
    %833 = vmatprep.subr.mxu0 0.0
    %834 = vmatpush1.msra.mxu0 0.0
    %835 = vmatprep.subr.mxu0 0.0
    %836 = vmatpush1.msra.mxu0 0.0
    %837 = vmatprep.mubr.f32.mxu0 0.0
    %838 = vmatmul.mubr.f32.gmra.mrb[0].mxu0 %v768
    %v839 = vpop.f32.mrb[0].mxu0
    %v840 = vadd.f32 %v766, %v839
    %v841 = vpop.f32.mrb[0].mxu0
    %842 = vmatprep.mubr.f32.mxu0 0.0
    %843 = vmatmul.mubr.f32.gmra.mrb[0].mxu0 %v771
    %v844 = vpop.f32.mrb[0].mxu0
    %v845 = vadd.f32 %v766, %v844
    %v846 = vpop.f32.mrb[0].mxu0
    %847 = vdwg.mxu0
    %v848 = vmul.f32 %v840, 0.5
    %v849 = vmul.f32 %v845, 0.5
    %v850 = vmul.f32 %v840, 0.70710677
    %v851 = vmul.f32 %v845, 0.70710677
    %v852 = vand.u32 2147483647, %v850
    %v853 = vand.u32 2147483647, %v851
    %v854 = vmul.f32 %v852, 0.3275911
    %v855 = vmul.f32 %v853, 0.3275911
    %v856 = vadd.f32 %v854, 1.0
    %v857 = vadd.f32 %v855, 1.0
    %v858 = vrcp.pop %v856
    %v859 = vmul.f32 1.0, %v858
    %v860 = vrcp.pop %v857
    %v861 = vmul.f32 1.0, %v860
    %v862 = vmul.f32 %v859, 1.0614054
    %v863 = vmul.f32 %v861, 1.0614054
    %v864 = vadd.f32 %v862, -1.4531521
    %v865 = vadd.f32 %v863, -1.4531521
    %v866 = vmul.f32 %v864, %v859
    %v867 = vmul.f32 %v865, %v861
    %v868 = vadd.f32 %v866, 1.4214138
    %v869 = vadd.f32 %v867, 1.4214138
    %v870 = vmul.f32 %v868, %v859
    %v871 = vmul.f32 %v869, %v861
    %v872 = vadd.f32 %v870, -0.28449672
    %v873 = vadd.f32 %v871, -0.28449672
    %v874 = vmul.f32 %v872, %v859
    %v875 = vmul.f32 %v873, %v861
    %v876 = vadd.f32 %v874, 0.2548296
    %v877 = vadd.f32 %v875, 0.2548296
    %v878 = vmul.f32 %v876, %v859
    %v879 = vmul.f32 %v877, %v861
    %v880 = vmul.f32 %v852, %v852
    %v881 = vmul.f32 %v853, %v853
    %v882 = vsub.f32 0.0, %v880
    %v883 = vsub.f32 0.0, %v881
    %v884 = vmul.f32 %v882, 1.442695
    %v885 = vpow.pop %v884
    %v886 = vmul.f32 %v883, 1.442695
    %v887 = vpow.pop %v886
    %v888 = vmul.f32 %v878, %v885
    %v889 = vmul.f32 %v879, %v887
    %v890 = vsub.f32 1.0, %v888
    %v891 = vsub.f32 1.0, %v889
    %vm892 = vcmp.lt.f32.partialorder %v850, 0.0
    %vm893 = vcmp.lt.f32.partialorder %v851, 0.0
    %v894 = vsub.f32 0.0, %v890
    %v895 = vsub.f32 0.0, %v891
    %v896 = vsel %vm892, %v894, %v890
    %v897 = vsel %vm893, %v895, %v891
    %v898 = vadd.f32 %v896, 1.0
    %v899 = vadd.f32 %v897, 1.0
    %v900 = vmul.f32 %v848, %v898
    %v901 = vmul.f32 %v849, %v899
    %v902 = vld [vmem:[#allocation2 + $0x1a0] sm:$0xff]
    %v903 = vld [vmem:[#allocation2 + $0x1a8] sm:$0xff]
    %v904 = vld [vmem:[#allocation2 + $0x1b0] sm:$0xff]
    %v905 = vld [vmem:[#allocation2 + $0x1b8] sm:$0xff]
    %v906 = vld [vmem:[#allocation2 + $0x1c0] sm:$0xff]
    %v907 = vld [vmem:[#allocation2 + $0x1c8] sm:$0xff]
    %v908 = vld [vmem:[#allocation2 + $0x1d0] sm:$0xff]
    %v909 = vld [vmem:[#allocation2 + $0x1d8] sm:$0xff]
    %v910 = vld [vmem:[#allocation2 + $0x1e0] sm:$0xff]
    %v911 = vld [vmem:[#allocation2 + $0x1e8] sm:$0xff]
    %v912 = vld [vmem:[#allocation2 + $0x1f0] sm:$0xff]
    %v913 = vld [vmem:[#allocation2 + $0x1f8] sm:$0xff]
    %v914 = vld [vmem:[#allocation2 + $0x200] sm:$0xff]
    %v915 = vld [vmem:[#allocation2 + $0x208] sm:$0xff]
    %v916 = vld [vmem:[#allocation2 + $0x210] sm:$0xff]
    %v917 = vld [vmem:[#allocation2 + $0x218] sm:$0xff]
    %v918 = vld [vmem:[#allocation2 + $0x220] sm:$0x1]
    %v919 = vlaneseq
    %v920 = vshrl.u32 %v919, 7
    %v921 = vsub.s32 0, %v920
    %v922 = vrot.slane %v918, %v921
    %923 = vmatprep.subr.mxu0 0.0
    %924 = vmatpush1.msra.mxu0 %v902
    %925 = vmatprep.subr.mxu0 0.0
    %926 = vmatpush1.msra.mxu0 %v903
    %927 = vmatprep.subr.mxu0 0.0
    %928 = vmatpush1.msra.mxu0 %v904
    %929 = vmatprep.subr.mxu0 0.0
    %930 = vmatpush1.msra.mxu0 %v905
    %931 = vmatprep.subr.mxu0 0.0
    %932 = vmatpush1.msra.mxu0 %v906
    %933 = vmatprep.subr.mxu0 0.0
    %934 = vmatpush1.msra.mxu0 %v907
    %935 = vmatprep.subr.mxu0 0.0
    %936 = vmatpush1.msra.mxu0 %v908
    %937 = vmatprep.subr.mxu0 0.0
    %938 = vmatpush1.msra.mxu0 %v909
    %939 = vmatprep.subr.mxu0 0.0
    %940 = vmatpush1.msra.mxu0 %v910
    %941 = vmatprep.subr.mxu0 0.0
    %942 = vmatpush1.msra.mxu0 %v911
    %943 = vmatprep.subr.mxu0 0.0
    %944 = vmatpush1.msra.mxu0 %v912
    %945 = vmatprep.subr.mxu0 0.0
    %946 = vmatpush1.msra.mxu0 %v913
    %947 = vmatprep.subr.mxu0 0.0
    %948 = vmatpush1.msra.mxu0 %v914
    %949 = vmatprep.subr.mxu0 0.0
    %950 = vmatpush1.msra.mxu0 %v915
    %951 = vmatprep.subr.mxu0 0.0
    %952 = vmatpush1.msra.mxu0 %v916
    %953 = vmatprep.subr.mxu0 0.0
    %954 = vmatpush1.msra.mxu0 %v917
    %955 = vmatprep.subr.mxu0 0.0
    %956 = vmatpush1.msra.mxu0 0.0
    %957 = vmatprep.subr.mxu0 0.0
    %958 = vmatpush1.msra.mxu0 0.0
    %959 = vmatprep.subr.mxu0 0.0
    %960 = vmatpush1.msra.mxu0 0.0
    %961 = vmatprep.subr.mxu0 0.0
    %962 = vmatpush1.msra.mxu0 0.0
    %963 = vmatprep.subr.mxu0 0.0
    %964 = vmatpush1.msra.mxu0 0.0
    %965 = vmatprep.subr.mxu0 0.0
    %966 = vmatpush1.msra.mxu0 0.0
    %967 = vmatprep.subr.mxu0 0.0
    %968 = vmatpush1.msra.mxu0 0.0
    %969 = vmatprep.subr.mxu0 0.0
    %970 = vmatpush1.msra.mxu0 0.0
    %971 = vmatprep.subr.mxu0 0.0
    %972 = vmatpush1.msra.mxu0 0.0
    %973 = vmatprep.subr.mxu0 0.0
    %974 = vmatpush1.msra.mxu0 0.0
    %975 = vmatprep.subr.mxu0 0.0
    %976 = vmatpush1.msra.mxu0 0.0
    %977 = vmatprep.subr.mxu0 0.0
    %978 = vmatpush1.msra.mxu0 0.0
    %979 = vmatprep.subr.mxu0 0.0
    %980 = vmatpush1.msra.mxu0 0.0
    %981 = vmatprep.subr.mxu0 0.0
    %982 = vmatpush1.msra.mxu0 0.0
    %983 = vmatprep.subr.mxu0 0.0
    %984 = vmatpush1.msra.mxu0 0.0
    %985 = vmatprep.subr.mxu0 0.0
    %986 = vmatpush1.msra.mxu0 0.0
    %987 = vmatprep.mubr.f32.mxu0 0.0
    %988 = vmatmul.mubr.f32.gmra.mrb[0].mxu0 %v900
    %v989 = vpop.f32.mrb[0].mxu0
    %v990 = vadd.f32 %v922, %v989
    %v991 = vpop.f32.mrb[0].mxu0
    %992 = vmatprep.mubr.f32.mxu0 0.0
    %993 = vmatmul.mubr.f32.gmra.mrb[0].mxu0 %v901
    %v994 = vpop.f32.mrb[0].mxu0
    %v995 = vadd.f32 %v922, %v994
    %v996 = vpop.f32.mrb[0].mxu0
    %997 = vdwg.mxu0
    %v998 = vadd.f32 %v756, %v990
    %v999 = vadd.f32 %v757, %v995
    %v1000 = vld [vmem:[#allocation2 + $0x168] sm:$0x1]
    %v1001 = vld [vmem:[#allocation2 + $0x170] sm:$0x1]
    %v1002 = vsel %vm158, %v998, 0.0
    %1003 = vadd.xlane.f32.xlu0 %v1002
    %v1004 = vpop.xlane.xlu0 %1003
    %v1005 = vsel %vm158, %v999, 0.0
    %1006 = vadd.xlane.f32.xlu0 %v1005
    %v1007 = vpop.xlane.xlu0 %1006
    %v1008 = vmul.f32 %v1004, %v725
    %v1009 = vmul.f32 %v1007, %v725
    %v1010 = vsub.f32 %v998, %v1008
    %v1011 = vsub.f32 %v999, %v1009
    %v1012 = vmul.f32 %v1010, %v1010
    %v1013 = vmul.f32 %v1011, %v1011
    %v1014 = vsel %vm158, %v1012, 0.0
    %1015 = vadd.xlane.f32.xlu0 %v1014
    %v1016 = vpop.xlane.xlu0 %1015
    %v1017 = vsel %vm158, %v1013, 0.0
    %1018 = vadd.xlane.f32.xlu0 %v1017
    %v1019 = vpop.xlane.xlu0 %1018
    %v1020 = vmul.f32 %v1016, %v725
    %v1021 = vmul.f32 %v1019, %v725
    %v1022 = vadd.f32 %v1020, 1e-05
    %v1023 = vadd.f32 %v1021, 1e-05
    %v1024 = vrsqrt.pop %v1022
    %v1025 = vrsqrt.pop %v1023
    %v1026 = vmul.f32 %v1010, %v1024
    %v1027 = vmul.f32 %v1011, %v1025
    %v1028 = vlaneseq
    %v1029 = vshrl.u32 %v1028, 7
    %v1030 = vsub.s32 0, %v1029
    %v1031 = vrot.slane %v1000, %v1030
    %v1032 = vmul.f32 %v1026, %v1031
    %v1033 = vmul.f32 %v1027, %v1031
    %v1034 = vlaneseq
    %v1035 = vshrl.u32 %v1034, 7
    %v1036 = vsub.s32 0, %v1035
    %v1037 = vrot.slane %v1001, %v1036
    %v1038 = vadd.f32 %v1032, %v1037
    %v1039 = vadd.f32 %v1033, %v1037
    %v1040 = vld [vmem:[#allocation2 + $0x228] sm:$0xff]
    %v1041 = vld [vmem:[#allocation2 + $0x230] sm:$0xff]
    %v1042 = vld [vmem:[#allocation2 + $0x238] sm:$0xff]
    %v1043 = vld [vmem:[#allocation2 + $0x240] sm:$0xff]
    %v1044 = vld [vmem:[#allocation2 + $0x248] sm:$0x1]
    %v1045 = vlaneseq
    %v1046 = vshrl.u32 %v1045, 7
    %v1047 = vsub.s32 0, %v1046
    %v1048 = vrot.slane %v1044, %v1047
    %v1050 = vsel %vm158, %v1038, 0
    %v1053 = vsel %vm158, %v1039, 0
    %1055 = vmatprep.subr.mxu0 0.0
    %1056 = vmatpush1.msra.mxu0 %v1040
    %1057 = vmatprep.subr.mxu0 0.0
    %1058 = vmatpush1.msra.mxu0 %v1041
    %1059 = vmatprep.subr.mxu0 0.0
    %1060 = vmatpush1.msra.mxu0 %v1042
    %1061 = vmatprep.subr.mxu0 0.0
    %1062 = vmatpush1.msra.mxu0 %v1043
    %1063 = vmatprep.subr.mxu0 0.0
    %1064 = vmatpush1.msra.mxu0 0.0
    %1065 = vmatprep.subr.mxu0 0.0
    %1066 = vmatpush1.msra.mxu0 0.0
    %1067 = vmatprep.subr.mxu0 0.0
    %1068 = vmatpush1.msra.mxu0 0.0
    %1069 = vmatprep.subr.mxu0 0.0
    %1070 = vmatpush1.msra.mxu0 0.0
    %1071 = vmatprep.subr.mxu0 0.0
    %1072 = vmatpush1.msra.mxu0 0.0
    %1073 = vmatprep.subr.mxu0 0.0
    %1074 = vmatpush1.msra.mxu0 0.0
    %1075 = vmatprep.subr.mxu0 0.0
    %1076 = vmatpush1.msra.mxu0 0.0
    %1077 = vmatprep.subr.mxu0 0.0
    %1078 = vmatpush1.msra.mxu0 0.0
    %1079 = vmatprep.subr.mxu0 0.0
    %1080 = vmatpush1.msra.mxu0 0.0
    %1081 = vmatprep.subr.mxu0 0.0
    %1082 = vmatpush1.msra.mxu0 0.0
    %1083 = vmatprep.subr.mxu0 0.0
    %1084 = vmatpush1.msra.mxu0 0.0
    %1085 = vmatprep.subr.mxu0 0.0
    %1086 = vmatpush1.msra.mxu0 0.0
    %1087 = vmatprep.subr.mxu0 0.0
    %1088 = vmatpush1.msra.mxu0 0.0
    %1089 = vmatprep.subr.mxu0 0.0
    %1090 = vmatpush1.msra.mxu0 0.0
    %1091 = vmatprep.subr.mxu0 0.0
    %1092 = vmatpush1.msra.mxu0 0.0
    %1093 = vmatprep.subr.mxu0 0.0
    %1094 = vmatpush1.msra.mxu0 0.0
    %1095 = vmatprep.subr.mxu0 0.0
    %1096 = vmatpush1.msra.mxu0 0.0
    %1097 = vmatprep.subr.mxu0 0.0
    %1098 = vmatpush1.msra.mxu0 0.0
    %1099 = vmatprep.subr.mxu0 0.0
    %1100 = vmatpush1.msra.mxu0 0.0
    %1101 = vmatprep.subr.mxu0 0.0
    %1102 = vmatpush1.msra.mxu0 0.0
    %1103 = vmatprep.subr.mxu0 0.0
    %1104 = vmatpush1.msra.mxu0 0.0
    %1105 = vmatprep.subr.mxu0 0.0
    %1106 = vmatpush1.msra.mxu0 0.0
    %1107 = vmatprep.subr.mxu0 0.0
    %1108 = vmatpush1.msra.mxu0 0.0
    %1109 = vmatprep.subr.mxu0 0.0
    %1110 = vmatpush1.msra.mxu0 0.0
    %1111 = vmatprep.subr.mxu0 0.0
    %1112 = vmatpush1.msra.mxu0 0.0
    %1113 = vmatprep.subr.mxu0 0.0
    %1114 = vmatpush1.msra.mxu0 0.0
    %1115 = vmatprep.subr.mxu0 0.0
    %1116 = vmatpush1.msra.mxu0 0.0
    %1117 = vmatprep.subr.mxu0 0.0
    %1118 = vmatpush1.msra.mxu0 0.0
    %1119 = vmatprep.mubr.f32.mxu0 0.0
    %1120 = vmatmul.mubr.f32.gmra.mrb[0].mxu0 %v1050
    %v1121 = vpop.f32.mrb[0].mxu0
    %v1122 = vadd.f32 %v1048, %v1121
    %v1123 = vpop.f32.mrb[0].mxu0
    %1124 = vmatprep.mubr.f32.mxu0 0.0
    %1125 = vmatmul.mubr.f32.gmra.mrb[0].mxu0 %v1053
    %v1126 = vpop.f32.mrb[0].mxu0
    %v1127 = vadd.f32 %v1048, %v1126
    %v1128 = vpop.f32.mrb[0].mxu0
    %1129 = vdwg.mxu0
    %v1130 = vmul.f32 %v1122, %v141
    %v1131 = vmul.f32 %v1127, %v142
    %v1132 = vmul.f32 %v1122, %v143
    %v1133 = vmul.f32 %v1127, %v144
    %v1134 = vmul.f32 %v1122, %v145
    %v1135 = vmul.f32 %v1127, %v146
    %v1136 = vmul.f32 %v1122, %v147
    %v1137 = vmul.f32 %v1127, %v148
    %1140 = vrot.lane.b32.xlu0 %v1122, 96
    %v1141 = vpop.permute.xlu0 %1140
    %1142 = vrot.lane.b32.xlu0 %v1127, 96
    %v1143 = vpop.permute.xlu0 %1142
    %v1145 = vsel %vm158, %v1130, 0
    %v1148 = vsel %vm158, %v1131, 0
    %v1151 = vsel %vm158, %v1132, 0
    %v1154 = vsel %vm158, %v1133, 0
    %v1157 = vsel %vm158, %v1134, 0
    %v1160 = vsel %vm158, %v1135, 0
    %v1163 = vsel %vm158, %v1136, 0
    %v1166 = vsel %vm158, %v1137, 0
    %v1168 = vsel %vm158, %v1141, 0
    %v1170 = vsel %vm158, %v1143, 0
    %1172 = vmatprep.subr.mxu0 0.0
    %1173 = vmatpush1.xpose.msra.mxu0 %v1168
    %1174 = vmatprep.subr.mxu0 0.0
    %1175 = vmatpush1.xpose.msra.mxu0 %v1170
    %1176 = vmatprep.subr.mxu0 0.0
    %1177 = vmatpush1.xpose.msra.mxu0 0.0
    %1178 = vmatprep.subr.mxu0 0.0
    %1179 = vmatpush1.xpose.msra.mxu0 0.0
    %1180 = vmatprep.subr.mxu0 0.0
    %1181 = vmatpush1.xpose.msra.mxu0 0.0
    %1182 = vmatprep.subr.mxu0 0.0
    %1183 = vmatpush1.xpose.msra.mxu0 0.0
    %1184 = vmatprep.subr.mxu0 0.0
    %1185 = vmatpush1.xpose.msra.mxu0 0.0
    %1186 = vmatprep.subr.mxu0 0.0
    %1187 = vmatpush1.xpose.msra.mxu0 0.0
    %1188 = vmatprep.subr.mxu0 0.0
    %1189 = vmatpush1.xpose.msra.mxu0 0.0
    %1190 = vmatprep.subr.mxu0 0.0
    %1191 = vmatpush1.xpose.msra.mxu0 0.0
    %1192 = vmatprep.subr.mxu0 0.0
    %1193 = vmatpush1.xpose.msra.mxu0 0.0
    %1194 = vmatprep.subr.mxu0 0.0
    %1195 = vmatpush1.xpose.msra.mxu0 0.0
    %1196 = vmatprep.subr.mxu0 0.0
    %1197 = vmatpush1.xpose.msra.mxu0 0.0
    %1198 = vmatprep.subr.mxu0 0.0
    %1199 = vmatpush1.xpose.msra.mxu0 0.0
    %1200 = vmatprep.subr.mxu0 0.0
    %1201 = vmatpush1.xpose.msra.mxu0 0.0
    %1202 = vmatprep.subr.mxu0 0.0
    %1203 = vmatpush1.xpose.msra.mxu0 0.0
    %1204 = vmatprep.subr.mxu0 0.0
    %1205 = vmatpush1.xpose.msra.mxu0 0.0
    %1206 = vmatprep.subr.mxu0 0.0
    %1207 = vmatpush1.xpose.msra.mxu0 0.0
    %1208 = vmatprep.subr.mxu0 0.0
    %1209 = vmatpush1.xpose.msra.mxu0 0.0
    %1210 = vmatprep.subr.mxu0 0.0
    %1211 = vmatpush1.xpose.msra.mxu0 0.0
    %1212 = vmatprep.subr.mxu0 0.0
    %1213 = vmatpush1.xpose.msra.mxu0 0.0
    %1214 = vmatprep.subr.mxu0 0.0
    %1215 = vmatpush1.xpose.msra.mxu0 0.0
    %1216 = vmatprep.subr.mxu0 0.0
    %1217 = vmatpush1.xpose.msra.mxu0 0.0
    %1218 = vmatprep.subr.mxu0 0.0
    %1219 = vmatpush1.xpose.msra.mxu0 0.0
    %1220 = vmatprep.subr.mxu0 0.0
    %1221 = vmatpush1.xpose.msra.mxu0 0.0
    %1222 = vmatprep.subr.mxu0 0.0
    %1223 = vmatpush1.xpose.msra.mxu0 0.0
    %1224 = vmatprep.subr.mxu0 0.0
    %1225 = vmatpush1.xpose.msra.mxu0 0.0
    %1226 = vmatprep.subr.mxu0 0.0
    %1227 = vmatpush1.xpose.msra.mxu0 0.0
    %1228 = vmatprep.subr.mxu0 0.0
    %1229 = vmatpush1.xpose.msra.mxu0 0.0
    %1230 = vmatprep.subr.mxu0 0.0
    %1231 = vmatpush1.xpose.msra.mxu0 0.0
    %1232 = vmatprep.subr.mxu0 0.0
    %1233 = vmatpush1.xpose.msra.mxu0 0.0
    %1234 = vmatprep.subr.mxu0 0.0
    %1235 = vmatpush1.xpose.msra.mxu0 0.0
    %1236 = vmatprep.mubr.f32.mxu0 0.0
    %1237 = vmatmul.mubr.f32.gmra.mrb[0].mxu0 %v1145
    %v1238 = vpop.f32.mrb[0].mxu0
    %v1239 = vadd.f32 %v133, %v1238
    %v1240 = vpop.f32.mrb[0].mxu0
    %1241 = vmatprep.mubr.f32.mxu0 0.0
    %1242 = vmatmul.mubr.f32.gmra.mrb[0].mxu0 %v1148
    %v1243 = vpop.f32.mrb[0].mxu0
    %v1244 = vadd.f32 %v134, %v1243
    %v1245 = vpop.f32.mrb[0].mxu0
    %1246 = vmatprep.mubr.f32.mxu0 0.0
    %1247 = vmatmul.mubr.f32.gmra.mrb[0].mxu0 %v1151
    %v1248 = vpop.f32.mrb[0].mxu0
    %v1249 = vadd.f32 %v135, %v1248
    %v1250 = vpop.f32.mrb[0].mxu0
    %1251 = vmatprep.mubr.f32.mxu0 0.0
    %1252 = vmatmul.mubr.f32.gmra.mrb[0].mxu0 %v1154
    %v1253 = vpop.f32.mrb[0].mxu0
    %v1254 = vadd.f32 %v136, %v1253
    %v1255 = vpop.f32.mrb[0].mxu0
    %1256 = vmatprep.mubr.f32.mxu0 0.0
    %1257 = vmatmul.mubr.f32.gmra.mrb[0].mxu0 %v1157
    %v1258 = vpop.f32.mrb[0].mxu0
    %v1259 = vadd.f32 %v137, %v1258
    %v1260 = vpop.f32.mrb[0].mxu0
    %1261 = vmatprep.mubr.f32.mxu0 0.0
    %1262 = vmatmul.mubr.f32.gmra.mrb[0].mxu0 %v1160
    %v1263 = vpop.f32.mrb[0].mxu0
    %v1264 = vadd.f32 %v138, %v1263
    %v1265 = vpop.f32.mrb[0].mxu0
    %1266 = vmatprep.mubr.f32.mxu0 0.0
    %1267 = vmatmul.mubr.f32.gmra.mrb[0].mxu0 %v1163
    %v1268 = vpop.f32.mrb[0].mxu0
    %v1269 = vadd.f32 %v139, %v1268
    %v1270 = vpop.f32.mrb[0].mxu0
    %1271 = vmatprep.mubr.f32.mxu0 0.0
    %1272 = vmatmul.mubr.f32.gmra.mrb[0].mxu0 %v1166
    %v1273 = vpop.f32.mrb[0].mxu0
    %v1274 = vadd.f32 %v140, %v1273
    %v1275 = vpop.f32.mrb[0].mxu0
    %1276 = vdwg.mxu0
    %v1277 = vsel %vm387, %v1239, -inf
    %1278 = vmax.xlane.f32.xlu0 %v1277
    %v1279 = vpop.xlane.xlu0 %1278
    %v1280 = vsel %vm387, %v1244, -inf
    %1281 = vmax.xlane.f32.xlu0 %v1280
    %v1282 = vpop.xlane.xlu0 %1281
    %v1283 = vsel %vm387, %v1249, -inf
    %1284 = vmax.xlane.f32.xlu0 %v1283
    %v1285 = vpop.xlane.xlu0 %1284
    %v1286 = vsel %vm387, %v1254, -inf
    %1287 = vmax.xlane.f32.xlu0 %v1286
    %v1288 = vpop.xlane.xlu0 %1287
    %v1289 = vsel %vm387, %v1259, -inf
    %1290 = vmax.xlane.f32.xlu0 %v1289
    %v1291 = vpop.xlane.xlu0 %1290
    %v1292 = vsel %vm387, %v1264, -inf
    %1293 = vmax.xlane.f32.xlu0 %v1292
    %v1294 = vpop.xlane.xlu0 %1293
    %v1295 = vsel %vm387, %v1269, -inf
    %1296 = vmax.xlane.f32.xlu0 %v1295
    %v1297 = vpop.xlane.xlu0 %1296
    %v1298 = vsel %vm387, %v1274, -inf
    %1299 = vmax.xlane.f32.xlu0 %v1298
    %v1300 = vpop.xlane.xlu0 %1299
    %v1301 = vsub.f32 %v1239, %v1279
    %v1302 = vsub.f32 %v1244, %v1282
    %v1303 = vsub.f32 %v1249, %v1285
    %v1304 = vsub.f32 %v1254, %v1288
    %v1305 = vsub.f32 %v1259, %v1291
    %v1306 = vsub.f32 %v1264, %v1294
    %v1307 = vsub.f32 %v1269, %v1297
    %v1308 = vsub.f32 %v1274, %v1300
    %v1309 = vmul.f32 %v1301, 1.442695
    %v1310 = vpow.pop %v1309
    %v1311 = vmul.f32 %v1302, 1.442695
    %v1312 = vpow.pop %v1311
    %v1313 = vmul.f32 %v1303, 1.442695
    %v1314 = vpow.pop %v1313
    %v1315 = vmul.f32 %v1304, 1.442695
    %v1316 = vpow.pop %v1315
    %v1317 = vmul.f32 %v1305, 1.442695
    %v1318 = vpow.pop %v1317
    %v1319 = vmul.f32 %v1306, 1.442695
    %v1320 = vpow.pop %v1319
    %v1321 = vmul.f32 %v1307, 1.442695
    %v1322 = vpow.pop %v1321
    %v1323 = vmul.f32 %v1308, 1.442695
    %v1324 = vpow.pop %v1323
    %v1325 = vsel %vm387, %v1310, 0.0
    %1326 = vadd.xlane.f32.xlu0 %v1325
    %v1327 = vpop.xlane.xlu0 %1326
    %v1328 = vsel %vm387, %v1312, 0.0
    %1329 = vadd.xlane.f32.xlu0 %v1328
    %v1330 = vpop.xlane.xlu0 %1329
    %v1331 = vsel %vm387, %v1314, 0.0
    %1332 = vadd.xlane.f32.xlu0 %v1331
    %v1333 = vpop.xlane.xlu0 %1332
    %v1334 = vsel %vm387, %v1316, 0.0
    %1335 = vadd.xlane.f32.xlu0 %v1334
    %v1336 = vpop.xlane.xlu0 %1335
    %v1337 = vsel %vm387, %v1318, 0.0
    %1338 = vadd.xlane.f32.xlu0 %v1337
    %v1339 = vpop.xlane.xlu0 %1338
    %v1340 = vsel %vm387, %v1320, 0.0
    %1341 = vadd.xlane.f32.xlu0 %v1340
    %v1342 = vpop.xlane.xlu0 %1341
    %v1343 = vsel %vm387, %v1322, 0.0
    %1344 = vadd.xlane.f32.xlu0 %v1343
    %v1345 = vpop.xlane.xlu0 %1344
    %v1346 = vsel %vm387, %v1324, 0.0
    %1347 = vadd.xlane.f32.xlu0 %v1346
    %v1348 = vpop.xlane.xlu0 %1347
    %v1349 = vrcp.pop %v1327
    %v1350 = vrcp.pop %v1330
    %v1351 = vrcp.pop %v1333
    %v1352 = vrcp.pop %v1336
    %v1353 = vrcp.pop %v1339
    %v1354 = vrcp.pop %v1342
    %v1355 = vrcp.pop %v1345
    %v1356 = vrcp.pop %v1348
    %v1357 = vmul.f32 %v1310, %v1349
    %v1358 = vmul.f32 %v1312, %v1350
    %v1359 = vmul.f32 %v1314, %v1351
    %v1360 = vmul.f32 %v1316, %v1352
    %v1361 = vmul.f32 %v1318, %v1353
    %v1362 = vmul.f32 %v1320, %v1354
    %v1363 = vmul.f32 %v1322, %v1355
    %v1364 = vmul.f32 %v1324, %v1356
    %1365 = vrot.lane.b32.xlu0 %v1122, 64
    %v1366 = vpop.permute.xlu0 %1365
    %1367 = vrot.lane.b32.xlu0 %v1127, 64
    %v1368 = vpop.permute.xlu0 %1367
    %v1372 = vsel %vm387, %v1357, 0
    %v1375 = vsel %vm387, %v1358, 0
    %v1378 = vsel %vm387, %v1359, 0
    %v1381 = vsel %vm387, %v1360, 0
    %v1384 = vsel %vm387, %v1361, 0
    %v1387 = vsel %vm387, %v1362, 0
    %v1390 = vsel %vm387, %v1363, 0
    %v1393 = vsel %vm387, %v1364, 0
    %1395 = vmatprep.subr.mxu0 0.0
    %1396 = vmatpush1.msra.mxu0 %v1366
    %1397 = vmatprep.subr.mxu0 0.0
    %1398 = vmatpush1.msra.mxu0 %v1368
    %1399 = vmatprep.subr.mxu0 0.0
    %1400 = vmatpush1.msra.mxu0 0.0
    %1401 = vmatprep.subr.mxu0 0.0
    %1402 = vmatpush1.msra.mxu0 0.0
    %1403 = vmatprep.subr.mxu0 0.0
    %1404 = vmatpush1.msra.mxu0 0.0
    %1405 = vmatprep.subr.mxu0 0.0
    %1406 = vmatpush1.msra.mxu0 0.0
    %1407 = vmatprep.subr.mxu0 0.0
    %1408 = vmatpush1.msra.mxu0 0.0
    %1409 = vmatprep.subr.mxu0 0.0
    %1410 = vmatpush1.msra.mxu0 0.0
    %1411 = vmatprep.subr.mxu0 0.0
    %1412 = vmatpush1.msra.mxu0 0.0
    %1413 = vmatprep.subr.mxu0 0.0
    %1414 = vmatpush1.msra.mxu0 0.0
    %1415 = vmatprep.subr.mxu0 0.0
    %1416 = vmatpush1.msra.mxu0 0.0
    %1417 = vmatprep.subr.mxu0 0.0
    %1418 = vmatpush1.msra.mxu0 0.0
    %1419 = vmatprep.subr.mxu0 0.0
    %1420 = vmatpush1.msra.mxu0 0.0
    %1421 = vmatprep.subr.mxu0 0.0
    %1422 = vmatpush1.msra.mxu0 0.0
    %1423 = vmatprep.subr.mxu0 0.0
    %1424 = vmatpush1.msra.mxu0 0.0
    %1425 = vmatprep.subr.mxu0 0.0
    %1426 = vmatpush1.msra.mxu0 0.0
    %1427 = vmatprep.subr.mxu0 0.0
    %1428 = vmatpush1.msra.mxu0 0.0
    %1429 = vmatprep.subr.mxu0 0.0
    %1430 = vmatpush1.msra.mxu0 0.0
    %1431 = vmatprep.subr.mxu0 0.0
    %1432 = vmatpush1.msra.mxu0 0.0
    %1433 = vmatprep.subr.mxu0 0.0
    %1434 = vmatpush1.msra.mxu0 0.0
    %1435 = vmatprep.subr.mxu0 0.0
    %1436 = vmatpush1.msra.mxu0 0.0
    %1437 = vmatprep.subr.mxu0 0.0
    %1438 = vmatpush1.msra.mxu0 0.0
    %1439 = vmatprep.subr.mxu0 0.0
    %1440 = vmatpush1.msra.mxu0 0.0
    %1441 = vmatprep.subr.mxu0 0.0
    %1442 = vmatpush1.msra.mxu0 0.0
    %1443 = vmatprep.subr.mxu0 0.0
    %1444 = vmatpush1.msra.mxu0 0.0
    %1445 = vmatprep.subr.mxu0 0.0
    %1446 = vmatpush1.msra.mxu0 0.0
    %1447 = vmatprep.subr.mxu0 0.0
    %1448 = vmatpush1.msra.mxu0 0.0
    %1449 = vmatprep.subr.mxu0 0.0
    %1450 = vmatpush1.msra.mxu0 0.0
    %1451 = vmatprep.subr.mxu0 0.0
    %1452 = vmatpush1.msra.mxu0 0.0
    %1453 = vmatprep.subr.mxu0 0.0
    %1454 = vmatpush1.msra.mxu0 0.0
    %1455 = vmatprep.subr.mxu0 0.0
    %1456 = vmatpush1.msra.mxu0 0.0
    %1457 = vmatprep.subr.mxu0 0.0
    %1458 = vmatpush1.msra.mxu0 0.0
    %1459 = vmatprep.mubr.f32.mxu0 0.0
    %1460 = vmatmul.mubr.f32.gmra.mrb[0].mxu0 %v1372
    %v1461 = vpop.f32.mrb[0].mxu0
    %v1462 = vadd.f32 0.0, %v1461
    %v1463 = vpop.f32.mrb[0].mxu0
    %1464 = vmatprep.mubr.f32.mxu0 0.0
    %1465 = vmatmul.mubr.f32.gmra.mrb[0].mxu0 %v1375
    %v1466 = vpop.f32.mrb[0].mxu0
    %v1467 = vadd.f32 0.0, %v1466
    %v1468 = vpop.f32.mrb[0].mxu0
    %1469 = vmatprep.mubr.f32.mxu0 0.0
    %1470 = vmatmul.mubr.f32.gmra.mrb[0].mxu0 %v1378
    %v1471 = vpop.f32.mrb[0].mxu0
    %v1472 = vadd.f32 0.0, %v1471
    %v1473 = vpop.f32.mrb[0].mxu0
    %1474 = vmatprep.mubr.f32.mxu0 0.0
    %1475 = vmatmul.mubr.f32.gmra.mrb[0].mxu0 %v1381
    %v1476 = vpop.f32.mrb[0].mxu0
    %v1477 = vadd.f32 0.0, %v1476
    %v1478 = vpop.f32.mrb[0].mxu0
    %1479 = vmatprep.mubr.f32.mxu0 0.0
    %1480 = vmatmul.mubr.f32.gmra.mrb[0].mxu0 %v1384
    %v1481 = vpop.f32.mrb[0].mxu0
    %v1482 = vadd.f32 0.0, %v1481
    %v1483 = vpop.f32.mrb[0].mxu0
    %1484 = vmatprep.mubr.f32.mxu0 0.0
    %1485 = vmatmul.mubr.f32.gmra.mrb[0].mxu0 %v1387
    %v1486 = vpop.f32.mrb[0].mxu0
    %v1487 = vadd.f32 0.0, %v1486
    %v1488 = vpop.f32.mrb[0].mxu0
    %1489 = vmatprep.mubr.f32.mxu0 0.0
    %1490 = vmatmul.mubr.f32.gmra.mrb[0].mxu0 %v1390
    %v1491 = vpop.f32.mrb[0].mxu0
    %v1492 = vadd.f32 0.0, %v1491
    %v1493 = vpop.f32.mrb[0].mxu0
    %1494 = vmatprep.mubr.f32.mxu0 0.0
    %1495 = vmatmul.mubr.f32.gmra.mrb[0].mxu0 %v1393
    %v1496 = vpop.f32.mrb[0].mxu0
    %v1497 = vadd.f32 0.0, %v1496
    %v1498 = vpop.f32.mrb[0].mxu0
    %1499 = vdwg.mxu0
    %v1500 = vmul.f32 %v1462, %v141
    %v1501 = vmul.f32 %v1467, %v142
    %v1502 = vmul.f32 %v1472, %v143
    %v1503 = vmul.f32 %v1477, %v144
    %v1504 = vmul.f32 %v1482, %v145
    %v1505 = vmul.f32 %v1487, %v146
    %v1506 = vmul.f32 %v1492, %v147
    %v1507 = vmul.f32 %v1497, %v148
    %v1508 = vadd.f32 %v1500, %v1502
    %v1509 = vadd.f32 %v1501, %v1503
    %v1510 = vadd.f32 %v1508, %v1504
    %v1511 = vadd.f32 %v1509, %v1505
    %v1512 = vadd.f32 %v1510, %v1506
    %v1513 = vadd.f32 %v1511, %v1507
    %v1514 = vld [vmem:[#allocation2 + $0x250] sm:$0xff]
    %v1515 = vld [vmem:[#allocation2 + $0x258] sm:$0xff]
    %v1516 = vld [vmem:[#allocation2 + $0x260] sm:$0xff]
    %v1517 = vld [vmem:[#allocation2 + $0x268] sm:$0xff]
    %v1518 = vld [vmem:[#allocation2 + $0x270] sm:$0x1]
    %v1519 = vlaneseq
    %v1520 = vshrl.u32 %v1519, 7
    %v1521 = vsub.s32 0, %v1520
    %v1522 = vrot.slane %v1518, %v1521
    %v1524 = vsel %vm158, %v1512, 0
    %v1527 = vsel %vm158, %v1513, 0
    %1529 = vmatprep.subr.mxu0 0.0
    %1530 = vmatpush1.msra.mxu0 %v1514
    %1531 = vmatprep.subr.mxu0 0.0
    %1532 = vmatpush1.msra.mxu0 %v1515
    %1533 = vmatprep.subr.mxu0 0.0
    %1534 = vmatpush1.msra.mxu0 %v1516
    %1535 = vmatprep.subr.mxu0 0.0
    %1536 = vmatpush1.msra.mxu0 %v1517
    %1537 = vmatprep.subr.mxu0 0.0
    %1538 = vmatpush1.msra.mxu0 0.0
    %1539 = vmatprep.subr.mxu0 0.0
    %1540 = vmatpush1.msra.mxu0 0.0
    %1541 = vmatprep.subr.mxu0 0.0
    %1542 = vmatpush1.msra.mxu0 0.0
    %1543 = vmatprep.subr.mxu0 0.0
    %1544 = vmatpush1.msra.mxu0 0.0
    %1545 = vmatprep.subr.mxu0 0.0
    %1546 = vmatpush1.msra.mxu0 0.0
    %1547 = vmatprep.subr.mxu0 0.0
    %1548 = vmatpush1.msra.mxu0 0.0
    %1549 = vmatprep.subr.mxu0 0.0
    %1550 = vmatpush1.msra.mxu0 0.0
    %1551 = vmatprep.subr.mxu0 0.0
    %1552 = vmatpush1.msra.mxu0 0.0
    %1553 = vmatprep.subr.mxu0 0.0
    %1554 = vmatpush1.msra.mxu0 0.0
    %1555 = vmatprep.subr.mxu0 0.0
    %1556 = vmatpush1.msra.mxu0 0.0
    %1557 = vmatprep.subr.mxu0 0.0
    %1558 = vmatpush1.msra.mxu0 0.0
    %1559 = vmatprep.subr.mxu0 0.0
    %1560 = vmatpush1.msra.mxu0 0.0
    %1561 = vmatprep.subr.mxu0 0.0
    %1562 = vmatpush1.msra.mxu0 0.0
    %1563 = vmatprep.subr.mxu0 0.0
    %1564 = vmatpush1.msra.mxu0 0.0
    %1565 = vmatprep.subr.mxu0 0.0
    %1566 = vmatpush1.msra.mxu0 0.0
    %1567 = vmatprep.subr.mxu0 0.0
    %1568 = vmatpush1.msra.mxu0 0.0
    %1569 = vmatprep.subr.mxu0 0.0
    %1570 = vmatpush1.msra.mxu0 0.0
    %1571 = vmatprep.subr.mxu0 0.0
    %1572 = vmatpush1.msra.mxu0 0.0
    %1573 = vmatprep.subr.mxu0 0.0
    %1574 = vmatpush1.msra.mxu0 0.0
    %1575 = vmatprep.subr.mxu0 0.0
    %1576 = vmatpush1.msra.mxu0 0.0
    %1577 = vmatprep.subr.mxu0 0.0
    %1578 = vmatpush1.msra.mxu0 0.0
    %1579 = vmatprep.subr.mxu0 0.0
    %1580 = vmatpush1.msra.mxu0 0.0
    %1581 = vmatprep.subr.mxu0 0.0
    %1582 = vmatpush1.msra.mxu0 0.0
    %1583 = vmatprep.subr.mxu0 0.0
    %1584 = vmatpush1.msra.mxu0 0.0
    %1585 = vmatprep.subr.mxu0 0.0
    %1586 = vmatpush1.msra.mxu0 0.0
    %1587 = vmatprep.subr.mxu0 0.0
    %1588 = vmatpush1.msra.mxu0 0.0
    %1589 = vmatprep.subr.mxu0 0.0
    %1590 = vmatpush1.msra.mxu0 0.0
    %1591 = vmatprep.subr.mxu0 0.0
    %1592 = vmatpush1.msra.mxu0 0.0
    %1593 = vmatprep.mubr.f32.mxu0 0.0
    %1594 = vmatmul.mubr.f32.gmra.mrb[0].mxu0 %v1524
    %v1595 = vpop.f32.mrb[0].mxu0
    %v1596 = vadd.f32 %v1522, %v1595
    %v1597 = vpop.f32.mrb[0].mxu0
    %1598 = vmatprep.mubr.f32.mxu0 0.0
    %1599 = vmatmul.mubr.f32.gmra.mrb[0].mxu0 %v1527
    %v1600 = vpop.f32.mrb[0].mxu0
    %v1601 = vadd.f32 %v1522, %v1600
    %v1602 = vpop.f32.mrb[0].mxu0
    %1603 = vdwg.mxu0
    %v1604 = vadd.f32 %v1038, %v1596
    %v1605 = vadd.f32 %v1039, %v1601
    %v1606 = vld [vmem:[#allocation2 + $0x278] sm:$0x1]
    %v1607 = vld [vmem:[#allocation2 + $0x280] sm:$0x1]
    %v1608 = vsel %vm158, %v1604, 0.0
    %1609 = vadd.xlane.f32.xlu0 %v1608
    %v1610 = vpop.xlane.xlu0 %1609
    %v1611 = vsel %vm158, %v1605, 0.0
    %1612 = vadd.xlane.f32.xlu0 %v1611
    %v1613 = vpop.xlane.xlu0 %1612
    %v1614 = vmul.f32 %v1610, %v725
    %v1615 = vmul.f32 %v1613, %v725
    %v1616 = vsub.f32 %v1604, %v1614
    %v1617 = vsub.f32 %v1605, %v1615
    %v1618 = vmul.f32 %v1616, %v1616
    %v1619 = vmul.f32 %v1617, %v1617
    %v1620 = vsel %vm158, %v1618, 0.0
    %1621 = vadd.xlane.f32.xlu0 %v1620
    %v1622 = vpop.xlane.xlu0 %1621
    %v1623 = vsel %vm158, %v1619, 0.0
    %1624 = vadd.xlane.f32.xlu0 %v1623
    %v1625 = vpop.xlane.xlu0 %1624
    %v1626 = vmul.f32 %v1622, %v725
    %v1627 = vmul.f32 %v1625, %v725
    %v1628 = vadd.f32 %v1626, 1e-05
    %v1629 = vadd.f32 %v1627, 1e-05
    %v1630 = vrsqrt.pop %v1628
    %v1631 = vrsqrt.pop %v1629
    %v1632 = vmul.f32 %v1616, %v1630
    %v1633 = vmul.f32 %v1617, %v1631
    %v1634 = vlaneseq
    %v1635 = vshrl.u32 %v1634, 7
    %v1636 = vsub.s32 0, %v1635
    %v1637 = vrot.slane %v1606, %v1636
    %v1638 = vmul.f32 %v1632, %v1637
    %v1639 = vmul.f32 %v1633, %v1637
    %v1640 = vlaneseq
    %v1641 = vshrl.u32 %v1640, 7
    %v1642 = vsub.s32 0, %v1641
    %v1643 = vrot.slane %v1607, %v1642
    %v1644 = vadd.f32 %v1638, %v1643
    %v1645 = vadd.f32 %v1639, %v1643
    %v1646 = vld [vmem:[#allocation2 + $0x298] sm:$0xff]
    %v1647 = vld [vmem:[#allocation2 + $0x2a0] sm:$0xff]
    %v1648 = vld [vmem:[#allocation2 + $0x2a8] sm:$0xff]
    %v1649 = vld [vmem:[#allocation2 + $0x2b0] sm:$0xff]
    %v1650 = vld [vmem:[#allocation2 + $0x2b8] sm:$0x1]
    %v1651 = vlaneseq
    %v1652 = vshrl.u32 %v1651, 7
    %v1653 = vsub.s32 0, %v1652
    %v1654 = vrot.slane %v1650, %v1653
    %v1656 = vsel %vm158, %v1644, 0
    %v1659 = vsel %vm158, %v1645, 0
    %1661 = vmatprep.subr.mxu0 0.0
    %1662 = vmatpush1.msra.mxu0 %v1646
    %1663 = vmatprep.subr.mxu0 0.0
    %1664 = vmatpush1.msra.mxu0 %v1647
    %1665 = vmatprep.subr.mxu0 0.0
    %1666 = vmatpush1.msra.mxu0 %v1648
    %1667 = vmatprep.subr.mxu0 0.0
    %1668 = vmatpush1.msra.mxu0 %v1649
    %1669 = vmatprep.subr.mxu0 0.0
    %1670 = vmatpush1.msra.mxu0 0.0
    %1671 = vmatprep.subr.mxu0 0.0
    %1672 = vmatpush1.msra.mxu0 0.0
    %1673 = vmatprep.subr.mxu0 0.0
    %1674 = vmatpush1.msra.mxu0 0.0
    %1675 = vmatprep.subr.mxu0 0.0
    %1676 = vmatpush1.msra.mxu0 0.0
    %1677 = vmatprep.subr.mxu0 0.0
    %1678 = vmatpush1.msra.mxu0 0.0
    %1679 = vmatprep.subr.mxu0 0.0
    %1680 = vmatpush1.msra.mxu0 0.0
    %1681 = vmatprep.subr.mxu0 0.0
    %1682 = vmatpush1.msra.mxu0 0.0
    %1683 = vmatprep.subr.mxu0 0.0
    %1684 = vmatpush1.msra.mxu0 0.0
    %1685 = vmatprep.subr.mxu0 0.0
    %1686 = vmatpush1.msra.mxu0 0.0
    %1687 = vmatprep.subr.mxu0 0.0
    %1688 = vmatpush1.msra.mxu0 0.0
    %1689 = vmatprep.subr.mxu0 0.0
    %1690 = vmatpush1.msra.mxu0 0.0
    %1691 = vmatprep.subr.mxu0 0.0
    %1692 = vmatpush1.msra.mxu0 0.0
    %1693 = vmatprep.subr.mxu0 0.0
    %1694 = vmatpush1.msra.mxu0 0.0
    %1695 = vmatprep.subr.mxu0 0.0
    %1696 = vmatpush1.msra.mxu0 0.0
    %1697 = vmatprep.subr.mxu0 0.0
    %1698 = vmatpush1.msra.mxu0 0.0
    %1699 = vmatprep.subr.mxu0 0.0
    %1700 = vmatpush1.msra.mxu0 0.0
    %1701 = vmatprep.subr.mxu0 0.0
    %1702 = vmatpush1.msra.mxu0 0.0
    %1703 = vmatprep.subr.mxu0 0.0
    %1704 = vmatpush1.msra.mxu0 0.0
    %1705 = vmatprep.subr.mxu0 0.0
    %1706 = vmatpush1.msra.mxu0 0.0
    %1707 = vmatprep.subr.mxu0 0.0
    %1708 = vmatpush1.msra.mxu0 0.0
    %1709 = vmatprep.subr.mxu0 0.0
    %1710 = vmatpush1.msra.mxu0 0.0
    %1711 = vmatprep.subr.mxu0 0.0
    %1712 = vmatpush1.msra.mxu0 0.0
    %1713 = vmatprep.subr.mxu0 0.0
    %1714 = vmatpush1.msra.mxu0 0.0
    %1715 = vmatprep.subr.mxu0 0.0
    %1716 = vmatpush1.msra.mxu0 0.0
    %1717 = vmatprep.subr.mxu0 0.0
    %1718 = vmatpush1.msra.mxu0 0.0
    %1719 = vmatprep.subr.mxu0 0.0
    %1720 = vmatpush1.msra.mxu0 0.0
    %1721 = vmatprep.subr.mxu0 0.0
    %1722 = vmatpush1.msra.mxu0 0.0
    %1723 = vmatprep.subr.mxu0 0.0
    %1724 = vmatpush1.msra.mxu0 0.0
    %1725 = vmatprep.mubr.f32.mxu0 0.0
    %1726 = vmatmul.mubr.f32.gmra.mrb[0].mxu0 %v1656
    %v1727 = vpop.f32.mrb[0].mxu0
    %v1728 = vadd.f32 %v1654, %v1727
    %v1729 = vpop.f32.mrb[0].mxu0
    %1730 = vmatprep.mubr.f32.mxu0 0.0
    %1731 = vmatmul.mubr.f32.gmra.mrb[0].mxu0 %v1659
    %v1732 = vpop.f32.mrb[0].mxu0
    %v1733 = vadd.f32 %v1654, %v1732
    %v1734 = vpop.f32.mrb[0].mxu0
    %1735 = vdwg.mxu0
    %v1736 = vmul.f32 %v1728, 0.5
    %v1737 = vmul.f32 %v1733, 0.5
    %v1738 = vmul.f32 %v1728, 0.70710677
    %v1739 = vmul.f32 %v1733, 0.70710677
    %v1740 = vand.u32 2147483647, %v1738
    %v1741 = vand.u32 2147483647, %v1739
    %v1742 = vmul.f32 %v1740, 0.3275911
    %v1743 = vmul.f32 %v1741, 0.3275911
    %v1744 = vadd.f32 %v1742, 1.0
    %v1745 = vadd.f32 %v1743, 1.0
    %v1746 = vrcp.pop %v1744
    %v1747 = vmul.f32 1.0, %v1746
    %v1748 = vrcp.pop %v1745
    %v1749 = vmul.f32 1.0, %v1748
    %v1750 = vmul.f32 %v1747, 1.0614054
    %v1751 = vmul.f32 %v1749, 1.0614054
    %v1752 = vadd.f32 %v1750, -1.4531521
    %v1753 = vadd.f32 %v1751, -1.4531521
    %v1754 = vmul.f32 %v1752, %v1747
    %v1755 = vmul.f32 %v1753, %v1749
    %v1756 = vadd.f32 %v1754, 1.4214138
    %v1757 = vadd.f32 %v1755, 1.4214138
    %v1758 = vmul.f32 %v1756, %v1747
    %v1759 = vmul.f32 %v1757, %v1749
    %v1760 = vadd.f32 %v1758, -0.28449672
    %v1761 = vadd.f32 %v1759, -0.28449672
    %v1762 = vmul.f32 %v1760, %v1747
    %v1763 = vmul.f32 %v1761, %v1749
    %v1764 = vadd.f32 %v1762, 0.2548296
    %v1765 = vadd.f32 %v1763, 0.2548296
    %v1766 = vmul.f32 %v1764, %v1747
    %v1767 = vmul.f32 %v1765, %v1749
    %v1768 = vmul.f32 %v1740, %v1740
    %v1769 = vmul.f32 %v1741, %v1741
    %v1770 = vsub.f32 0.0, %v1768
    %v1771 = vsub.f32 0.0, %v1769
    %v1772 = vmul.f32 %v1770, 1.442695
    %v1773 = vpow.pop %v1772
    %v1774 = vmul.f32 %v1771, 1.442695
    %v1775 = vpow.pop %v1774
    %v1776 = vmul.f32 %v1766, %v1773
    %v1777 = vmul.f32 %v1767, %v1775
    %v1778 = vsub.f32 1.0, %v1776
    %v1779 = vsub.f32 1.0, %v1777
    %vm1780 = vcmp.lt.f32.partialorder %v1738, 0.0
    %vm1781 = vcmp.lt.f32.partialorder %v1739, 0.0
    %v1782 = vsub.f32 0.0, %v1778
    %v1783 = vsub.f32 0.0, %v1779
    %v1784 = vsel %vm1780, %v1782, %v1778
    %v1785 = vsel %vm1781, %v1783, %v1779
    %v1786 = vadd.f32 %v1784, 1.0
    %v1787 = vadd.f32 %v1785, 1.0
    %v1788 = vmul.f32 %v1736, %v1786
    %v1789 = vmul.f32 %v1737, %v1787
    %v1790 = vld [vmem:[#allocation2 + $0x2c0] sm:$0xff]
    %v1791 = vld [vmem:[#allocation2 + $0x2c8] sm:$0xff]
    %v1792 = vld [vmem:[#allocation2 + $0x2d0] sm:$0xff]
    %v1793 = vld [vmem:[#allocation2 + $0x2d8] sm:$0xff]
    %v1794 = vld [vmem:[#allocation2 + $0x2e0] sm:$0xff]
    %v1795 = vld [vmem:[#allocation2 + $0x2e8] sm:$0xff]
    %v1796 = vld [vmem:[#allocation2 + $0x2f0] sm:$0xff]
    %v1797 = vld [vmem:[#allocation2 + $0x2f8] sm:$0xff]
    %v1798 = vld [vmem:[#allocation2 + $0x300] sm:$0xff]
    %v1799 = vld [vmem:[#allocation2 + $0x308] sm:$0xff]
    %v1800 = vld [vmem:[#allocation2 + $0x310] sm:$0xff]
    %v1801 = vld [vmem:[#allocation2 + $0x318] sm:$0xff]
    %v1802 = vld [vmem:[#allocation2 + $0x320] sm:$0xff]
    %v1803 = vld [vmem:[#allocation2 + $0x328] sm:$0xff]
    %v1804 = vld [vmem:[#allocation2 + $0x330] sm:$0xff]
    %v1805 = vld [vmem:[#allocation2 + $0x338] sm:$0xff]
    %v1806 = vld [vmem:[#allocation2 + $0x340] sm:$0x1]
    %v1807 = vlaneseq
    %v1808 = vshrl.u32 %v1807, 7
    %v1809 = vsub.s32 0, %v1808
    %v1810 = vrot.slane %v1806, %v1809
    %1811 = vmatprep.subr.mxu0 0.0
    %1812 = vmatpush1.msra.mxu0 %v1790
    %1813 = vmatprep.subr.mxu0 0.0
    %1814 = vmatpush1.msra.mxu0 %v1791
    %1815 = vmatprep.subr.mxu0 0.0
    %1816 = vmatpush1.msra.mxu0 %v1792
    %1817 = vmatprep.subr.mxu0 0.0
    %1818 = vmatpush1.msra.mxu0 %v1793
    %1819 = vmatprep.subr.mxu0 0.0
    %1820 = vmatpush1.msra.mxu0 %v1794
    %1821 = vmatprep.subr.mxu0 0.0
    %1822 = vmatpush1.msra.mxu0 %v1795
    %1823 = vmatprep.subr.mxu0 0.0
    %1824 = vmatpush1.msra.mxu0 %v1796
    %1825 = vmatprep.subr.mxu0 0.0
    %1826 = vmatpush1.msra.mxu0 %v1797
    %1827 = vmatprep.subr.mxu0 0.0
    %1828 = vmatpush1.msra.mxu0 %v1798
    %1829 = vmatprep.subr.mxu0 0.0
    %1830 = vmatpush1.msra.mxu0 %v1799
    %1831 = vmatprep.subr.mxu0 0.0
    %1832 = vmatpush1.msra.mxu0 %v1800
    %1833 = vmatprep.subr.mxu0 0.0
    %1834 = vmatpush1.msra.mxu0 %v1801
    %1835 = vmatprep.subr.mxu0 0.0
    %1836 = vmatpush1.msra.mxu0 %v1802
    %1837 = vmatprep.subr.mxu0 0.0
    %1838 = vmatpush1.msra.mxu0 %v1803
    %1839 = vmatprep.subr.mxu0 0.0
    %1840 = vmatpush1.msra.mxu0 %v1804
    %1841 = vmatprep.subr.mxu0 0.0
    %1842 = vmatpush1.msra.mxu0 %v1805
    %1843 = vmatprep.subr.mxu0 0.0
    %1844 = vmatpush1.msra.mxu0 0.0
    %1845 = vmatprep.subr.mxu0 0.0
    %1846 = vmatpush1.msra.mxu0 0.0
    %1847 = vmatprep.subr.mxu0 0.0
    %1848 = vmatpush1.msra.mxu0 0.0
    %1849 = vmatprep.subr.mxu0 0.0
    %1850 = vmatpush1.msra.mxu0 0.0
    %1851 = vmatprep.subr.mxu0 0.0
    %1852 = vmatpush1.msra.mxu0 0.0
    %1853 = vmatprep.subr.mxu0 0.0
    %1854 = vmatpush1.msra.mxu0 0.0
    %1855 = vmatprep.subr.mxu0 0.0
    %1856 = vmatpush1.msra.mxu0 0.0
    %1857 = vmatprep.subr.mxu0 0.0
    %1858 = vmatpush1.msra.mxu0 0.0
    %1859 = vmatprep.subr.mxu0 0.0
    %1860 = vmatpush1.msra.mxu0 0.0
    %1861 = vmatprep.subr.mxu0 0.0
    %1862 = vmatpush1.msra.mxu0 0.0
    %1863 = vmatprep.subr.mxu0 0.0
    %1864 = vmatpush1.msra.mxu0 0.0
    %1865 = vmatprep.subr.mxu0 0.0
    %1866 = vmatpush1.msra.mxu0 0.0
    %1867 = vmatprep.subr.mxu0 0.0
    %1868 = vmatpush1.msra.mxu0 0.0
    %1869 = vmatprep.subr.mxu0 0.0
    %1870 = vmatpush1.msra.mxu0 0.0
    %1871 = vmatprep.subr.mxu0 0.0
    %1872 = vmatpush1.msra.mxu0 0.0
    %1873 = vmatprep.subr.mxu0 0.0
    %1874 = vmatpush1.msra.mxu0 0.0
    %1875 = vmatprep.mubr.f32.mxu0 0.0
    %1876 = vmatmul.mubr.f32.gmra.mrb[0].mxu0 %v1788
    %v1877 = vpop.f32.mrb[0].mxu0
    %v1878 = vadd.f32 %v1810, %v1877
    %v1879 = vpop.f32.mrb[0].mxu0
    %1880 = vmatprep.mubr.f32.mxu0 0.0
    %1881 = vmatmul.mubr.f32.gmra.mrb[0].mxu0 %v1789
    %v1882 = vpop.f32.mrb[0].mxu0
    %v1883 = vadd.f32 %v1810, %v1882
    %v1884 = vpop.f32.mrb[0].mxu0
    %1885 = vdwg.mxu0
    %v1886 = vadd.f32 %v1644, %v1878
    %v1887 = vadd.f32 %v1645, %v1883
    %v1888 = vld [vmem:[#allocation2 + $0x288] sm:$0x1]
    %v1889 = vld [vmem:[#allocation2 + $0x290] sm:$0x1]
    %v1890 = vsel %vm158, %v1886, 0.0
    %1891 = vadd.xlane.f32.xlu0 %v1890
    %v1892 = vpop.xlane.xlu0 %1891
    %v1893 = vsel %vm158, %v1887, 0.0
    %1894 = vadd.xlane.f32.xlu0 %v1893
    %v1895 = vpop.xlane.xlu0 %1894
    %v1896 = vmul.f32 %v1892, %v725
    %v1897 = vmul.f32 %v1895, %v725
    %v1898 = vsub.f32 %v1886, %v1896
    %v1899 = vsub.f32 %v1887, %v1897
    %v1900 = vmul.f32 %v1898, %v1898
    %v1901 = vmul.f32 %v1899, %v1899
    %v1902 = vsel %vm158, %v1900, 0.0
    %1903 = vadd.xlane.f32.xlu0 %v1902
    %v1904 = vpop.xlane.xlu0 %1903
    %v1905 = vsel %vm158, %v1901, 0.0
    %1906 = vadd.xlane.f32.xlu0 %v1905
    %v1907 = vpop.xlane.xlu0 %1906
    %v1908 = vmul.f32 %v1904, %v725
    %v1909 = vmul.f32 %v1907, %v725
    %v1910 = vadd.f32 %v1908, 1e-05
    %v1911 = vadd.f32 %v1909, 1e-05
    %v1912 = vrsqrt.pop %v1910
    %v1913 = vrsqrt.pop %v1911
    %v1914 = vmul.f32 %v1898, %v1912
    %v1915 = vmul.f32 %v1899, %v1913
    %v1916 = vlaneseq
    %v1917 = vshrl.u32 %v1916, 7
    %v1918 = vsub.s32 0, %v1917
    %v1919 = vrot.slane %v1888, %v1918
    %v1920 = vmul.f32 %v1914, %v1919
    %v1921 = vmul.f32 %v1915, %v1919
    %v1922 = vlaneseq
    %v1923 = vshrl.u32 %v1922, 7
    %v1924 = vsub.s32 0, %v1923
    %v1925 = vrot.slane %v1889, %v1924
    %v1926 = vadd.f32 %v1920, %v1925
    %v1927 = vadd.f32 %v1921, %v1925
    %v1928 = vld [vmem:[#allocation2 + $0xf8] sm:$0x1]
    %v1929 = vld [vmem:[#allocation2 + $0x100] sm:$0x1]
    %v1930 = vsel %vm158, %v1926, 0.0
    %1931 = vadd.xlane.f32.xlu0 %v1930
    %v1932 = vpop.xlane.xlu0 %1931
    %v1933 = vsel %vm158, %v1927, 0.0
    %1934 = vadd.xlane.f32.xlu0 %v1933
    %v1935 = vpop.xlane.xlu0 %1934
    %v1936 = vmul.f32 %v1932, %v725
    %v1937 = vmul.f32 %v1935, %v725
    %v1938 = vsub.f32 %v1926, %v1936
    %v1939 = vsub.f32 %v1927, %v1937
    %v1940 = vmul.f32 %v1938, %v1938
    %v1941 = vmul.f32 %v1939, %v1939
    %v1942 = vsel %vm158, %v1940, 0.0
    %1943 = vadd.xlane.f32.xlu0 %v1942
    %v1944 = vpop.xlane.xlu0 %1943
    %v1945 = vsel %vm158, %v1941, 0.0
    %1946 = vadd.xlane.f32.xlu0 %v1945
    %v1947 = vpop.xlane.xlu0 %1946
    %v1948 = vmul.f32 %v1944, %v725
    %v1949 = vmul.f32 %v1947, %v725
    %v1950 = vadd.f32 %v1948, 1e-05
    %v1951 = vadd.f32 %v1949, 1e-05
    %v1952 = vrsqrt.pop %v1950
    %v1953 = vrsqrt.pop %v1951
    %v1954 = vmul.f32 %v1938, %v1952
    %v1955 = vmul.f32 %v1939, %v1953
    %v1956 = vlaneseq
    %v1957 = vshrl.u32 %v1956, 7
    %v1958 = vsub.s32 0, %v1957
    %v1959 = vrot.slane %v1928, %v1958
    %v1960 = vmul.f32 %v1954, %v1959
    %v1961 = vmul.f32 %v1955, %v1959
    %v1962 = vlaneseq
    %v1963 = vshrl.u32 %v1962, 7
    %v1964 = vsub.s32 0, %v1963
    %v1965 = vrot.slane %v1929, %v1964
    %v1966 = vadd.f32 %v1960, %v1965
    %v1967 = vadd.f32 %v1961, %v1965
    %v1968 = vld [vmem:[#allocation2 + $0xd0] sm:$0xff]
    %v1969 = vld [vmem:[#allocation2 + $0xd8] sm:$0xff]
    %v1970 = vld [vmem:[#allocation2 + $0xe0] sm:$0xff]
    %v1971 = vld [vmem:[#allocation2 + $0xe8] sm:$0xff]
    %v1972 = vld [vmem:[#allocation2 + $0xf0] sm:$0x1]
    %v1973 = vlaneseq
    %v1974 = vshrl.u32 %v1973, 7
    %v1975 = vsub.s32 0, %v1974
    %v1976 = vrot.slane %v1972, %v1975
    %v1978 = vsel %vm158, %v1966, 0
    %v1981 = vsel %vm158, %v1967, 0
    %1983 = vmatprep.subr.mxu0 0.0
    %1984 = vmatpush1.msra.mxu0 %v1968
    %1985 = vmatprep.subr.mxu0 0.0
    %1986 = vmatpush1.msra.mxu0 %v1969
    %1987 = vmatprep.subr.mxu0 0.0
    %1988 = vmatpush1.msra.mxu0 %v1970
    %1989 = vmatprep.subr.mxu0 0.0
    %1990 = vmatpush1.msra.mxu0 %v1971
    %1991 = vmatprep.subr.mxu0 0.0
    %1992 = vmatpush1.msra.mxu0 0.0
    %1993 = vmatprep.subr.mxu0 0.0
    %1994 = vmatpush1.msra.mxu0 0.0
    %1995 = vmatprep.subr.mxu0 0.0
    %1996 = vmatpush1.msra.mxu0 0.0
    %1997 = vmatprep.subr.mxu0 0.0
    %1998 = vmatpush1.msra.mxu0 0.0
    %1999 = vmatprep.subr.mxu0 0.0
    %2000 = vmatpush1.msra.mxu0 0.0
    %2001 = vmatprep.subr.mxu0 0.0
    %2002 = vmatpush1.msra.mxu0 0.0
    %2003 = vmatprep.subr.mxu0 0.0
    %2004 = vmatpush1.msra.mxu0 0.0
    %2005 = vmatprep.subr.mxu0 0.0
    %2006 = vmatpush1.msra.mxu0 0.0
    %2007 = vmatprep.subr.mxu0 0.0
    %2008 = vmatpush1.msra.mxu0 0.0
    %2009 = vmatprep.subr.mxu0 0.0
    %2010 = vmatpush1.msra.mxu0 0.0
    %2011 = vmatprep.subr.mxu0 0.0
    %2012 = vmatpush1.msra.mxu0 0.0
    %2013 = vmatprep.subr.mxu0 0.0
    %2014 = vmatpush1.msra.mxu0 0.0
    %2015 = vmatprep.subr.mxu0 0.0
    %2016 = vmatpush1.msra.mxu0 0.0
    %2017 = vmatprep.subr.mxu0 0.0
    %2018 = vmatpush1.msra.mxu0 0.0
    %2019 = vmatprep.subr.mxu0 0.0
    %2020 = vmatpush1.msra.mxu0 0.0
    %2021 = vmatprep.subr.mxu0 0.0
    %2022 = vmatpush1.msra.mxu0 0.0
    %2023 = vmatprep.subr.mxu0 0.0
    %2024 = vmatpush1.msra.mxu0 0.0
    %2025 = vmatprep.subr.mxu0 0.0
    %2026 = vmatpush1.msra.mxu0 0.0
    %2027 = vmatprep.subr.mxu0 0.0
    %2028 = vmatpush1.msra.mxu0 0.0
    %2029 = vmatprep.subr.mxu0 0.0
    %2030 = vmatpush1.msra.mxu0 0.0
    %2031 = vmatprep.subr.mxu0 0.0
    %2032 = vmatpush1.msra.mxu0 0.0
    %2033 = vmatprep.subr.mxu0 0.0
    %2034 = vmatpush1.msra.mxu0 0.0
    %2035 = vmatprep.subr.mxu0 0.0
    %2036 = vmatpush1.msra.mxu0 0.0
    %2037 = vmatprep.subr.mxu0 0.0
    %2038 = vmatpush1.msra.mxu0 0.0
    %2039 = vmatprep.subr.mxu0 0.0
    %2040 = vmatpush1.msra.mxu0 0.0
    %2041 = vmatprep.subr.mxu0 0.0
    %2042 = vmatpush1.msra.mxu0 0.0
    %2043 = vmatprep.subr.mxu0 0.0
    %2044 = vmatpush1.msra.mxu0 0.0
    %2045 = vmatprep.subr.mxu0 0.0
    %2046 = vmatpush1.msra.mxu0 0.0
    %2047 = vmatprep.mubr.f32.mxu0 0.0
    %2048 = vmatmul.mubr.f32.gmra.mrb[0].mxu0 %v1978
    %v2049 = vpop.f32.mrb[0].mxu0
    %v2050 = vadd.f32 %v1976, %v2049
    %v2051 = vpop.f32.mrb[0].mxu0
    %2052 = vmatprep.mubr.f32.mxu0 0.0
    %2053 = vmatmul.mubr.f32.gmra.mrb[0].mxu0 %v1981
    %v2054 = vpop.f32.mrb[0].mxu0
    %v2055 = vadd.f32 %v1976, %v2054
    %v2056 = vpop.f32.mrb[0].mxu0
    %2057 = vdwg.mxu0
    %2058 = vst [vmem:[%s2] sm:$0xff] %v2050
    %2059 = vst [vmem:[%s2 + $0x8] sm:$0xff] %v2055
    // Predicated region
    $region14: #{model_forward.1} parent=1 // pred_check
      _
    $region15: #{model_forward.1} parent=1 // pred_check_branch
      %2061 = sbr.rel (0) target = $region17
    $region16: #{model_forward.1} parent=1 // pred_region
      _
    $region17: #{model_forward.1} parent=1 // pred_fallthru
      _
    // Predicated region
    $region18: #{model_forward.1} parent=1 // pred_check
      _
    $region19: #{model_forward.1} parent=1 // pred_check_branch
      %2063 = sbr.rel (0) target = $region21
    $region20: #{model_forward.1} parent=1 // pred_region
      _
    $region21: #{model_forward.1} parent=1 // pred_fallthru
      _
    %2064 = vsyncpa [#allocation3], 1

</llo_original>
